<compile_context>
chip_gen: v7x
topology: tpu7x:2x2x1
jax: 0.10.0
libtpu: 0.0.40
codegen_flags: <defaults>
</compile_context>

<pallas_src>
import jax
import jax.numpy as jnp
import numpy as np
from jax.experimental import pallas as pl
from jax.experimental.pallas import tpu as pltpu  # noqa: F401  (kept for parity/extensions)


def classification_task_kernel(
    xaug_ref,                        # (T*B, 2E)   [x[t] | x[T-1-t]] per row-block
    wih_ref, bih_ref,                # (2E, 8H), (1, 8H)  folded textenc+ih weights, gate-interleaved
    whh_ref,                         # (2H, 8H)    block-diagonal recurrent weights, gate-interleaved
    wfc1_ref, bfc1_ref,              # (2H, H), (1, H)
    wfc2_ref, bfc2_ref,              # (H, L), (1, L)
    logits_ref,                      # out: (B, L)
    statevec_ref,                    # out: (B, 2H)
):
    TB = xaug_ref.shape[0]
    B = statevec_ref.shape[0]
    T = TB // B
    H2 = whh_ref.shape[0]            # 2H  (fwd + bwd hidden, fused carry width)

    # ---- input-to-hidden for all timesteps & both directions: ONE matmul ----
    ih = (
        jnp.dot(xaug_ref[...], wih_ref[...], preferred_element_type=jnp.float32)
        + bih_ref[...]
    )                                # (T*B, 8H)

    # ---- fused bidirectional LSTM (PyTorch gate order i, f, g, o) ----
    whh = whh_ref[...]               # hoist recurrent weights; stay vreg-resident

    h = jnp.zeros((B, H2), jnp.float32)     # [h_fwd | h_bwd]
    c = jnp.zeros((B, H2), jnp.float32)     # [c_fwd | c_bwd]

    for t in range(T):               # static, fully unrolled
        gates = (
            ih[t * B:(t + 1) * B, :]
            + jnp.dot(h, whh, preferred_element_type=jnp.float32)
        )                            # (B, 8H); each gate is a contiguous 2H-lane block
        i = jax.nn.sigmoid(gates[:, 0 * H2:1 * H2])
        f = jax.nn.sigmoid(gates[:, 1 * H2:2 * H2])
        g = jnp.tanh(gates[:, 2 * H2:3 * H2])
        o = jax.nn.sigmoid(gates[:, 3 * H2:4 * H2])
        c = f * c + i * g
        h = o * jnp.tanh(c)

    # final carry is already concat(last fwd h, last bwd h)
    statevec_ref[...] = h

    # ---- final_fc: Linear -> ReLU -> Dropout(0.5) [eval: identity] -> Linear ----
    hid = jnp.maximum(
        jnp.dot(h, wfc1_ref[...], preferred_element_type=jnp.float32) + bfc1_ref[...],
        0.0,
    )
    logits_ref[...] = (
        jnp.dot(hid, wfc2_ref[...], preferred_element_type=jnp.float32) + bfc2_ref[...]
    )


def classification_task(state_input, params):
    """state_input: (T, B, E) float32.  Returns (outputs, state_vec)."""
    T, B, E = state_input.shape
    H = params["whh_f"].shape[0]
    L = params["wfc2"].shape[1]

    # ---------- host-side weight packing (pure linear-algebra identities) ----------
    def gate_interleave(m_f, m_b):
        # m_f, m_b: (rows, 4H) in PyTorch gate order i,f,g,o
        # -> (rows, 8H) with layout [i_f,i_b | f_f,f_b | g_f,g_b | o_f,o_b]
        cols = []
        for g in range(4):
            cols.append(m_f[:, g * H:(g + 1) * H])
            cols.append(m_b[:, g * H:(g + 1) * H])
        return jnp.concatenate(cols, axis=1)

    # fold textenc projection into the input-to-hidden weights
    wf = params["wtext"] @ params["wih_f"]                    # (E, 4H)
    wb = params["wtext"] @ params["wih_b"]                    # (E, 4H)
    zeros_w = jnp.zeros_like(wf)
    wih_comb = jnp.concatenate(
        [gate_interleave(wf, zeros_w), gate_interleave(zeros_w, wb)], axis=0
    )                                                         # (2E, 8H)

    bf = params["btext"] @ params["wih_f"] + params["b_f"]    # (1, 4H)
    bb = params["btext"] @ params["wih_b"] + params["b_b"]    # (1, 4H)
    bih_comb = gate_interleave(bf, bb)                        # (1, 8H)

    # block-diagonal recurrent weights for the fused [h_fwd | h_bwd] carry
    zeros_h = jnp.zeros_like(params["whh_f"])
    whh_blk = jnp.concatenate(
        [gate_interleave(params["whh_f"], zeros_h),
         gate_interleave(zeros_h, params["whh_b"])], axis=0
    )                                                         # (2H, 8H)

    # input layout plumbing: row block t carries [x[t] | x[T-1-t]]
    x_aug = jnp.concatenate([state_input, state_input[::-1]], axis=-1)  # (T, B, 2E)
    x_aug = x_aug.reshape(T * B, 2 * E).astype(jnp.float32)

    logits, state_vec = pl.pallas_call(
        classification_task_kernel,
        out_shape=(
            jax.ShapeDtypeStruct((B, L), jnp.float32),
            jax.ShapeDtypeStruct((B, 2 * H), jnp.float32),
        ),
    )(
        x_aug,
        wih_comb, bih_comb,
        whh_blk,
        params["wfc1"], params["bfc1"],
        params["wfc2"], params["bfc2"],
    )
    # .squeeze() in the reference (no-op here since B>1 and n_labels>1)
    return jnp.squeeze(logits), state_vec


def init_params(key, E, H, L):
    ks = jax.random.split(key, 12)
    s = 0.1
    p = {
        "wtext": jax.random.normal(ks[0], (E, 2 * H)) * s,
        "btext": jax.random.normal(ks[1], (1, 2 * H)) * s,
        "wih_f": jax.random.normal(ks[2], (2 * H, 4 * H)) * s,
        "whh_f": jax.random.normal(ks[3], (H, 4 * H)) * s,
        "b_f":   jax.random.normal(ks[4], (1, 4 * H)) * s,
        "wih_b": jax.random.normal(ks[5], (2 * H, 4 * H)) * s,
        "whh_b": jax.random.normal(ks[6], (H, 4 * H)) * s,
        "b_b":   jax.random.normal(ks[7], (1, 4 * H)) * s,
        "wfc1":  jax.random.normal(ks[8], (2 * H, H)) * s,
        "bfc1":  jax.random.normal(ks[9], (1, H)) * s,
        "wfc2":  jax.random.normal(ks[10], (H, L)) * s,
        "bfc2":  jax.random.normal(ks[11], (1, L)) * s,
    }
    return {k: v.astype(jnp.float32) for k, v in p.items()}


def reference(x, p):
    """Pure-JAX reference of the same forward pass (original unfused formulation)."""
    T, B, E = x.shape
    H = p["whh_f"].shape[0]
    enc = jnp.einsum("tbe,eh->tbh", x, p["wtext"]) + p["btext"]

    def cell(xt, h, c, wih, whh, b):
        g = xt @ wih + h @ whh + b
        i = jax.nn.sigmoid(g[:, :H])
        f = jax.nn.sigmoid(g[:, H:2 * H])
        gg = jnp.tanh(g[:, 2 * H:3 * H])
        o = jax.nn.sigmoid(g[:, 3 * H:])
        c = f * c + i * gg
        h = o * jnp.tanh(c)
        return h, c

    h = c = jnp.zeros((B, H), jnp.float32)
    for t in range(T):
        h, c = cell(enc[t], h, c, p["wih_f"], p["whh_f"], p["b_f"])
    h_f = h
    h = c = jnp.zeros((B, H), jnp.float32)
    for t in reversed(range(T)):
        h, c = cell(enc[t], h, c, p["wih_b"], p["whh_b"], p["b_b"])
    h_b = h
    sv = jnp.concatenate([h_f, h_b], axis=-1)
    hid = jnp.maximum(sv @ p["wfc1"] + p["bfc1"], 0.0)
    return jnp.squeeze(hid @ p["wfc2"] + p["bfc2"]), sv


if __name__ == "__main__":
    # opt.hsize1 == opt.hsize2 == 32 (so Linear(hsize1*2, hsize2) matches the
    # bi-LSTM output 2*hsize2), embed_size=32, n_labels=5, input_streams=['cap'].
    T, B, E, H, L = 8, 2, 32, 32, 5
    key = jax.random.PRNGKey(0)
    kx, kp = jax.random.split(key)

    state_input = jax.random.normal(kx, (T, B, E), dtype=jnp.float32)
    params = init_params(kp, E, H, L)

    outputs, state_vec = classification_task(state_input, params)
    jax.block_until_ready((outputs, state_vec))

    ref_out, ref_sv = reference(state_input, params)
    np.testing.assert_allclose(np.asarray(outputs), np.asarray(ref_out),
                               atol=2e-2, rtol=2e-2)
    np.testing.assert_allclose(np.asarray(state_vec), np.asarray(ref_sv),
                               atol=2e-2, rtol=2e-2)

    print("KERNEL_OK")
</pallas_src>

<mosaic_0001>
module attributes {stable_mosaic.version = 11 : i64} {
  func.func @classification_task_kernel(%arg0: memref<16x64xf32, #tpu.memory_space<vmem>>, %arg1: memref<64x256xf32, #tpu.memory_space<vmem>>, %arg2: memref<1x256xf32, #tpu.memory_space<vmem>>, %arg3: memref<64x256xf32, #tpu.memory_space<vmem>>, %arg4: memref<64x32xf32, #tpu.memory_space<vmem>>, %arg5: memref<1x32xf32, #tpu.memory_space<vmem>>, %arg6: memref<32x5xf32, #tpu.memory_space<vmem>>, %arg7: memref<1x5xf32, #tpu.memory_space<vmem>>, %arg8: memref<2x5xf32, #tpu.memory_space<vmem>>, %arg9: memref<2x64xf32, #tpu.memory_space<vmem>>) attributes {dimension_semantics = [], scalar_prefetch = 0 : i64, scratch_operands = 0 : i64, tpu.core_type = #tpu.core_type<tc>} {
    %c0 = arith.constant 0 : index
    %c0_0 = arith.constant 0 : index
    %0 = vector.load %arg0[%c0, %c0_0] : memref<16x64xf32, #tpu.memory_space<vmem>>, vector<16x64xf32>
    %c0_1 = arith.constant 0 : index
    %c0_2 = arith.constant 0 : index
    %1 = vector.load %arg1[%c0_1, %c0_2] : memref<64x256xf32, #tpu.memory_space<vmem>>, vector<64x256xf32>
    %cst = arith.constant dense<0.000000e+00> : vector<16x256xf32>
    %2 = tpu.matmul %0, %1, %cst {dimension_numbers = #tpu.dot_dimension_numbers<[1], [0], [0], [1], [0, 0, 1, 1], [], []>} : vector<16x64xf32>, vector<64x256xf32>, vector<16x256xf32> -> vector<16x256xf32>
    %c0_3 = arith.constant 0 : index
    %c0_4 = arith.constant 0 : index
    %3 = vector.load %arg2[%c0_3, %c0_4] : memref<1x256xf32, #tpu.memory_space<vmem>>, vector<1x256xf32>
    %4 = vector.broadcast %3 : vector<1x256xf32> to vector<16x256xf32>
    %5 = arith.addf %2, %4 : vector<16x256xf32>
    %c0_5 = arith.constant 0 : index
    %c0_6 = arith.constant 0 : index
    %6 = vector.load %arg3[%c0_5, %c0_6] : memref<64x256xf32, #tpu.memory_space<vmem>>, vector<64x256xf32>
    %cst_7 = arith.constant 0.000000e+00 : f32
    %7 = vector.broadcast %cst_7 : f32 to vector<2x64xf32>
    %cst_8 = arith.constant 0.000000e+00 : f32
    %8 = vector.broadcast %cst_8 : f32 to vector<2x64xf32>
    %9 = vector.extract_strided_slice %5 {offsets = [0, 0], sizes = [2, 256], strides = [1, 1]} : vector<16x256xf32> to vector<2x256xf32>
    %cst_9 = arith.constant dense<0.000000e+00> : vector<2x256xf32>
    %10 = tpu.matmul %7, %6, %cst_9 {dimension_numbers = #tpu.dot_dimension_numbers<[1], [0], [0], [1], [0, 0, 1, 1], [], []>} : vector<2x64xf32>, vector<64x256xf32>, vector<2x256xf32> -> vector<2x256xf32>
    %11 = arith.addf %9, %10 : vector<2x256xf32>
    %12 = vector.extract_strided_slice %11 {offsets = [0, 0], sizes = [2, 64], strides = [1, 1]} : vector<2x256xf32> to vector<2x64xf32>
    %13 = arith.negf %12 : vector<2x64xf32>
    %14 = math.exp %13 : vector<2x64xf32>
    %cst_10 = arith.constant 1.000000e+00 : f32
    %15 = vector.broadcast %cst_10 : f32 to vector<2x64xf32>
    %16 = arith.addf %15, %14 : vector<2x64xf32>
    %17 = arith.divf %15, %16 : vector<2x64xf32>
    %18 = vector.extract_strided_slice %11 {offsets = [0, 64], sizes = [2, 64], strides = [1, 1]} : vector<2x256xf32> to vector<2x64xf32>
    %19 = arith.negf %18 : vector<2x64xf32>
    %20 = math.exp %19 : vector<2x64xf32>
    %cst_11 = arith.constant 1.000000e+00 : f32
    %21 = vector.broadcast %cst_11 : f32 to vector<2x64xf32>
    %22 = arith.addf %21, %20 : vector<2x64xf32>
    %23 = arith.divf %21, %22 : vector<2x64xf32>
    %24 = vector.extract_strided_slice %11 {offsets = [0, 128], sizes = [2, 64], strides = [1, 1]} : vector<2x256xf32> to vector<2x64xf32>
    %25 = math.tanh %24 : vector<2x64xf32>
    %26 = vector.extract_strided_slice %11 {offsets = [0, 192], sizes = [2, 64], strides = [1, 1]} : vector<2x256xf32> to vector<2x64xf32>
    %27 = arith.negf %26 : vector<2x64xf32>
    %28 = math.exp %27 : vector<2x64xf32>
    %cst_12 = arith.constant 1.000000e+00 : f32
    %29 = vector.broadcast %cst_12 : f32 to vector<2x64xf32>
    %30 = arith.addf %29, %28 : vector<2x64xf32>
    %31 = arith.divf %29, %30 : vector<2x64xf32>
    %32 = arith.mulf %23, %8 : vector<2x64xf32>
    %33 = arith.mulf %17, %25 : vector<2x64xf32>
    %34 = arith.addf %32, %33 : vector<2x64xf32>
    %35 = math.tanh %34 : vector<2x64xf32>
    %36 = arith.mulf %31, %35 : vector<2x64xf32>
    %37 = vector.extract_strided_slice %5 {offsets = [2, 0], sizes = [2, 256], strides = [1, 1]} : vector<16x256xf32> to vector<2x256xf32>
    %cst_13 = arith.constant dense<0.000000e+00> : vector<2x256xf32>
    %38 = tpu.matmul %36, %6, %cst_13 {dimension_numbers = #tpu.dot_dimension_numbers<[1], [0], [0], [1], [0, 0, 1, 1], [], []>} : vector<2x64xf32>, vector<64x256xf32>, vector<2x256xf32> -> vector<2x256xf32>
    %39 = arith.addf %37, %38 : vector<2x256xf32>
    %40 = vector.extract_strided_slice %39 {offsets = [0, 0], sizes = [2, 64], strides = [1, 1]} : vector<2x256xf32> to vector<2x64xf32>
    %41 = arith.negf %40 : vector<2x64xf32>
    %42 = math.exp %41 : vector<2x64xf32>
    %cst_14 = arith.constant 1.000000e+00 : f32
    %43 = vector.broadcast %cst_14 : f32 to vector<2x64xf32>
    %44 = arith.addf %43, %42 : vector<2x64xf32>
    %45 = arith.divf %43, %44 : vector<2x64xf32>
    %46 = vector.extract_strided_slice %39 {offsets = [0, 64], sizes = [2, 64], strides = [1, 1]} : vector<2x256xf32> to vector<2x64xf32>
    %47 = arith.negf %46 : vector<2x64xf32>
    %48 = math.exp %47 : vector<2x64xf32>
    %cst_15 = arith.constant 1.000000e+00 : f32
    %49 = vector.broadcast %cst_15 : f32 to vector<2x64xf32>
    %50 = arith.addf %49, %48 : vector<2x64xf32>
    %51 = arith.divf %49, %50 : vector<2x64xf32>
    %52 = vector.extract_strided_slice %39 {offsets = [0, 128], sizes = [2, 64], strides = [1, 1]} : vector<2x256xf32> to vector<2x64xf32>
    %53 = math.tanh %52 : vector<2x64xf32>
    %54 = vector.extract_strided_slice %39 {offsets = [0, 192], sizes = [2, 64], strides = [1, 1]} : vector<2x256xf32> to vector<2x64xf32>
    %55 = arith.negf %54 : vector<2x64xf32>
    %56 = math.exp %55 : vector<2x64xf32>
    %cst_16 = arith.constant 1.000000e+00 : f32
    %57 = vector.broadcast %cst_16 : f32 to vector<2x64xf32>
    %58 = arith.addf %57, %56 : vector<2x64xf32>
    %59 = arith.divf %57, %58 : vector<2x64xf32>
    %60 = arith.mulf %51, %34 : vector<2x64xf32>
    %61 = arith.mulf %45, %53 : vector<2x64xf32>
    %62 = arith.addf %60, %61 : vector<2x64xf32>
    %63 = math.tanh %62 : vector<2x64xf32>
    %64 = arith.mulf %59, %63 : vector<2x64xf32>
    %65 = vector.extract_strided_slice %5 {offsets = [4, 0], sizes = [2, 256], strides = [1, 1]} : vector<16x256xf32> to vector<2x256xf32>
    %cst_17 = arith.constant dense<0.000000e+00> : vector<2x256xf32>
    %66 = tpu.matmul %64, %6, %cst_17 {dimension_numbers = #tpu.dot_dimension_numbers<[1], [0], [0], [1], [0, 0, 1, 1], [], []>} : vector<2x64xf32>, vector<64x256xf32>, vector<2x256xf32> -> vector<2x256xf32>
    %67 = arith.addf %65, %66 : vector<2x256xf32>
    %68 = vector.extract_strided_slice %67 {offsets = [0, 0], sizes = [2, 64], strides = [1, 1]} : vector<2x256xf32> to vector<2x64xf32>
    %69 = arith.negf %68 : vector<2x64xf32>
    %70 = math.exp %69 : vector<2x64xf32>
    %cst_18 = arith.constant 1.000000e+00 : f32
    %71 = vector.broadcast %cst_18 : f32 to vector<2x64xf32>
    %72 = arith.addf %71, %70 : vector<2x64xf32>
    %73 = arith.divf %71, %72 : vector<2x64xf32>
    %74 = vector.extract_strided_slice %67 {offsets = [0, 64], sizes = [2, 64], strides = [1, 1]} : vector<2x256xf32> to vector<2x64xf32>
    %75 = arith.negf %74 : vector<2x64xf32>
    %76 = math.exp %75 : vector<2x64xf32>
    %cst_19 = arith.constant 1.000000e+00 : f32
    %77 = vector.broadcast %cst_19 : f32 to vector<2x64xf32>
    %78 = arith.addf %77, %76 : vector<2x64xf32>
    %79 = arith.divf %77, %78 : vector<2x64xf32>
    %80 = vector.extract_strided_slice %67 {offsets = [0, 128], sizes = [2, 64], strides = [1, 1]} : vector<2x256xf32> to vector<2x64xf32>
    %81 = math.tanh %80 : vector<2x64xf32>
    %82 = vector.extract_strided_slice %67 {offsets = [0, 192], sizes = [2, 64], strides = [1, 1]} : vector<2x256xf32> to vector<2x64xf32>
    %83 = arith.negf %82 : vector<2x64xf32>
    %84 = math.exp %83 : vector<2x64xf32>
    %cst_20 = arith.constant 1.000000e+00 : f32
    %85 = vector.broadcast %cst_20 : f32 to vector<2x64xf32>
    %86 = arith.addf %85, %84 : vector<2x64xf32>
    %87 = arith.divf %85, %86 : vector<2x64xf32>
    %88 = arith.mulf %79, %62 : vector<2x64xf32>
    %89 = arith.mulf %73, %81 : vector<2x64xf32>
    %90 = arith.addf %88, %89 : vector<2x64xf32>
    %91 = math.tanh %90 : vector<2x64xf32>
    %92 = arith.mulf %87, %91 : vector<2x64xf32>
    %93 = vector.extract_strided_slice %5 {offsets = [6, 0], sizes = [2, 256], strides = [1, 1]} : vector<16x256xf32> to vector<2x256xf32>
    %cst_21 = arith.constant dense<0.000000e+00> : vector<2x256xf32>
    %94 = tpu.matmul %92, %6, %cst_21 {dimension_numbers = #tpu.dot_dimension_numbers<[1], [0], [0], [1], [0, 0, 1, 1], [], []>} : vector<2x64xf32>, vector<64x256xf32>, vector<2x256xf32> -> vector<2x256xf32>
    %95 = arith.addf %93, %94 : vector<2x256xf32>
    %96 = vector.extract_strided_slice %95 {offsets = [0, 0], sizes = [2, 64], strides = [1, 1]} : vector<2x256xf32> to vector<2x64xf32>
    %97 = arith.negf %96 : vector<2x64xf32>
    %98 = math.exp %97 : vector<2x64xf32>
    %cst_22 = arith.constant 1.000000e+00 : f32
    %99 = vector.broadcast %cst_22 : f32 to vector<2x64xf32>
    %100 = arith.addf %99, %98 : vector<2x64xf32>
    %101 = arith.divf %99, %100 : vector<2x64xf32>
    %102 = vector.extract_strided_slice %95 {offsets = [0, 64], sizes = [2, 64], strides = [1, 1]} : vector<2x256xf32> to vector<2x64xf32>
    %103 = arith.negf %102 : vector<2x64xf32>
    %104 = math.exp %103 : vector<2x64xf32>
    %cst_23 = arith.constant 1.000000e+00 : f32
    %105 = vector.broadcast %cst_23 : f32 to vector<2x64xf32>
    %106 = arith.addf %105, %104 : vector<2x64xf32>
    %107 = arith.divf %105, %106 : vector<2x64xf32>
    %108 = vector.extract_strided_slice %95 {offsets = [0, 128], sizes = [2, 64], strides = [1, 1]} : vector<2x256xf32> to vector<2x64xf32>
    %109 = math.tanh %108 : vector<2x64xf32>
    %110 = vector.extract_strided_slice %95 {offsets = [0, 192], sizes = [2, 64], strides = [1, 1]} : vector<2x256xf32> to vector<2x64xf32>
    %111 = arith.negf %110 : vector<2x64xf32>
    %112 = math.exp %111 : vector<2x64xf32>
    %cst_24 = arith.constant 1.000000e+00 : f32
    %113 = vector.broadcast %cst_24 : f32 to vector<2x64xf32>
    %114 = arith.addf %113, %112 : vector<2x64xf32>
    %115 = arith.divf %113, %114 : vector<2x64xf32>
    %116 = arith.mulf %107, %90 : vector<2x64xf32>
    %117 = arith.mulf %101, %109 : vector<2x64xf32>
    %118 = arith.addf %116, %117 : vector<2x64xf32>
    %119 = math.tanh %118 : vector<2x64xf32>
    %120 = arith.mulf %115, %119 : vector<2x64xf32>
    %121 = vector.extract_strided_slice %5 {offsets = [8, 0], sizes = [2, 256], strides = [1, 1]} : vector<16x256xf32> to vector<2x256xf32>
    %cst_25 = arith.constant dense<0.000000e+00> : vector<2x256xf32>
    %122 = tpu.matmul %120, %6, %cst_25 {dimension_numbers = #tpu.dot_dimension_numbers<[1], [0], [0], [1], [0, 0, 1, 1], [], []>} : vector<2x64xf32>, vector<64x256xf32>, vector<2x256xf32> -> vector<2x256xf32>
    %123 = arith.addf %121, %122 : vector<2x256xf32>
    %124 = vector.extract_strided_slice %123 {offsets = [0, 0], sizes = [2, 64], strides = [1, 1]} : vector<2x256xf32> to vector<2x64xf32>
    %125 = arith.negf %124 : vector<2x64xf32>
    %126 = math.exp %125 : vector<2x64xf32>
    %cst_26 = arith.constant 1.000000e+00 : f32
    %127 = vector.broadcast %cst_26 : f32 to vector<2x64xf32>
    %128 = arith.addf %127, %126 : vector<2x64xf32>
    %129 = arith.divf %127, %128 : vector<2x64xf32>
    %130 = vector.extract_strided_slice %123 {offsets = [0, 64], sizes = [2, 64], strides = [1, 1]} : vector<2x256xf32> to vector<2x64xf32>
    %131 = arith.negf %130 : vector<2x64xf32>
    %132 = math.exp %131 : vector<2x64xf32>
    %cst_27 = arith.constant 1.000000e+00 : f32
    %133 = vector.broadcast %cst_27 : f32 to vector<2x64xf32>
    %134 = arith.addf %133, %132 : vector<2x64xf32>
    %135 = arith.divf %133, %134 : vector<2x64xf32>
    %136 = vector.extract_strided_slice %123 {offsets = [0, 128], sizes = [2, 64], strides = [1, 1]} : vector<2x256xf32> to vector<2x64xf32>
    %137 = math.tanh %136 : vector<2x64xf32>
    %138 = vector.extract_strided_slice %123 {offsets = [0, 192], sizes = [2, 64], strides = [1, 1]} : vector<2x256xf32> to vector<2x64xf32>
    %139 = arith.negf %138 : vector<2x64xf32>
    %140 = math.exp %139 : vector<2x64xf32>
    %cst_28 = arith.constant 1.000000e+00 : f32
    %141 = vector.broadcast %cst_28 : f32 to vector<2x64xf32>
    %142 = arith.addf %141, %140 : vector<2x64xf32>
    %143 = arith.divf %141, %142 : vector<2x64xf32>
    %144 = arith.mulf %135, %118 : vector<2x64xf32>
    %145 = arith.mulf %129, %137 : vector<2x64xf32>
    %146 = arith.addf %144, %145 : vector<2x64xf32>
    %147 = math.tanh %146 : vector<2x64xf32>
    %148 = arith.mulf %143, %147 : vector<2x64xf32>
    %149 = vector.extract_strided_slice %5 {offsets = [10, 0], sizes = [2, 256], strides = [1, 1]} : vector<16x256xf32> to vector<2x256xf32>
    %cst_29 = arith.constant dense<0.000000e+00> : vector<2x256xf32>
    %150 = tpu.matmul %148, %6, %cst_29 {dimension_numbers = #tpu.dot_dimension_numbers<[1], [0], [0], [1], [0, 0, 1, 1], [], []>} : vector<2x64xf32>, vector<64x256xf32>, vector<2x256xf32> -> vector<2x256xf32>
    %151 = arith.addf %149, %150 : vector<2x256xf32>
    %152 = vector.extract_strided_slice %151 {offsets = [0, 0], sizes = [2, 64], strides = [1, 1]} : vector<2x256xf32> to vector<2x64xf32>
    %153 = arith.negf %152 : vector<2x64xf32>
    %154 = math.exp %153 : vector<2x64xf32>
    %cst_30 = arith.constant 1.000000e+00 : f32
    %155 = vector.broadcast %cst_30 : f32 to vector<2x64xf32>
    %156 = arith.addf %155, %154 : vector<2x64xf32>
    %157 = arith.divf %155, %156 : vector<2x64xf32>
    %158 = vector.extract_strided_slice %151 {offsets = [0, 64], sizes = [2, 64], strides = [1, 1]} : vector<2x256xf32> to vector<2x64xf32>
    %159 = arith.negf %158 : vector<2x64xf32>
    %160 = math.exp %159 : vector<2x64xf32>
    %cst_31 = arith.constant 1.000000e+00 : f32
    %161 = vector.broadcast %cst_31 : f32 to vector<2x64xf32>
    %162 = arith.addf %161, %160 : vector<2x64xf32>
    %163 = arith.divf %161, %162 : vector<2x64xf32>
    %164 = vector.extract_strided_slice %151 {offsets = [0, 128], sizes = [2, 64], strides = [1, 1]} : vector<2x256xf32> to vector<2x64xf32>
    %165 = math.tanh %164 : vector<2x64xf32>
    %166 = vector.extract_strided_slice %151 {offsets = [0, 192], sizes = [2, 64], strides = [1, 1]} : vector<2x256xf32> to vector<2x64xf32>
    %167 = arith.negf %166 : vector<2x64xf32>
    %168 = math.exp %167 : vector<2x64xf32>
    %cst_32 = arith.constant 1.000000e+00 : f32
    %169 = vector.broadcast %cst_32 : f32 to vector<2x64xf32>
    %170 = arith.addf %169, %168 : vector<2x64xf32>
    %171 = arith.divf %169, %170 : vector<2x64xf32>
    %172 = arith.mulf %163, %146 : vector<2x64xf32>
    %173 = arith.mulf %157, %165 : vector<2x64xf32>
    %174 = arith.addf %172, %173 : vector<2x64xf32>
    %175 = math.tanh %174 : vector<2x64xf32>
    %176 = arith.mulf %171, %175 : vector<2x64xf32>
    %177 = vector.extract_strided_slice %5 {offsets = [12, 0], sizes = [2, 256], strides = [1, 1]} : vector<16x256xf32> to vector<2x256xf32>
    %cst_33 = arith.constant dense<0.000000e+00> : vector<2x256xf32>
    %178 = tpu.matmul %176, %6, %cst_33 {dimension_numbers = #tpu.dot_dimension_numbers<[1], [0], [0], [1], [0, 0, 1, 1], [], []>} : vector<2x64xf32>, vector<64x256xf32>, vector<2x256xf32> -> vector<2x256xf32>
    %179 = arith.addf %177, %178 : vector<2x256xf32>
    %180 = vector.extract_strided_slice %179 {offsets = [0, 0], sizes = [2, 64], strides = [1, 1]} : vector<2x256xf32> to vector<2x64xf32>
    %181 = arith.negf %180 : vector<2x64xf32>
    %182 = math.exp %181 : vector<2x64xf32>
    %cst_34 = arith.constant 1.000000e+00 : f32
    %183 = vector.broadcast %cst_34 : f32 to vector<2x64xf32>
    %184 = arith.addf %183, %182 : vector<2x64xf32>
    %185 = arith.divf %183, %184 : vector<2x64xf32>
    %186 = vector.extract_strided_slice %179 {offsets = [0, 64], sizes = [2, 64], strides = [1, 1]} : vector<2x256xf32> to vector<2x64xf32>
    %187 = arith.negf %186 : vector<2x64xf32>
    %188 = math.exp %187 : vector<2x64xf32>
    %cst_35 = arith.constant 1.000000e+00 : f32
    %189 = vector.broadcast %cst_35 : f32 to vector<2x64xf32>
    %190 = arith.addf %189, %188 : vector<2x64xf32>
    %191 = arith.divf %189, %190 : vector<2x64xf32>
    %192 = vector.extract_strided_slice %179 {offsets = [0, 128], sizes = [2, 64], strides = [1, 1]} : vector<2x256xf32> to vector<2x64xf32>
    %193 = math.tanh %192 : vector<2x64xf32>
    %194 = vector.extract_strided_slice %179 {offsets = [0, 192], sizes = [2, 64], strides = [1, 1]} : vector<2x256xf32> to vector<2x64xf32>
    %195 = arith.negf %194 : vector<2x64xf32>
    %196 = math.exp %195 : vector<2x64xf32>
    %cst_36 = arith.constant 1.000000e+00 : f32
    %197 = vector.broadcast %cst_36 : f32 to vector<2x64xf32>
    %198 = arith.addf %197, %196 : vector<2x64xf32>
    %199 = arith.divf %197, %198 : vector<2x64xf32>
    %200 = arith.mulf %191, %174 : vector<2x64xf32>
    %201 = arith.mulf %185, %193 : vector<2x64xf32>
    %202 = arith.addf %200, %201 : vector<2x64xf32>
    %203 = math.tanh %202 : vector<2x64xf32>
    %204 = arith.mulf %199, %203 : vector<2x64xf32>
    %205 = vector.extract_strided_slice %5 {offsets = [14, 0], sizes = [2, 256], strides = [1, 1]} : vector<16x256xf32> to vector<2x256xf32>
    %cst_37 = arith.constant dense<0.000000e+00> : vector<2x256xf32>
    %206 = tpu.matmul %204, %6, %cst_37 {dimension_numbers = #tpu.dot_dimension_numbers<[1], [0], [0], [1], [0, 0, 1, 1], [], []>} : vector<2x64xf32>, vector<64x256xf32>, vector<2x256xf32> -> vector<2x256xf32>
    %207 = arith.addf %205, %206 : vector<2x256xf32>
    %208 = vector.extract_strided_slice %207 {offsets = [0, 0], sizes = [2, 64], strides = [1, 1]} : vector<2x256xf32> to vector<2x64xf32>
    %209 = arith.negf %208 : vector<2x64xf32>
    %210 = math.exp %209 : vector<2x64xf32>
    %cst_38 = arith.constant 1.000000e+00 : f32
    %211 = vector.broadcast %cst_38 : f32 to vector<2x64xf32>
    %212 = arith.addf %211, %210 : vector<2x64xf32>
    %213 = arith.divf %211, %212 : vector<2x64xf32>
    %214 = vector.extract_strided_slice %207 {offsets = [0, 64], sizes = [2, 64], strides = [1, 1]} : vector<2x256xf32> to vector<2x64xf32>
    %215 = arith.negf %214 : vector<2x64xf32>
    %216 = math.exp %215 : vector<2x64xf32>
    %cst_39 = arith.constant 1.000000e+00 : f32
    %217 = vector.broadcast %cst_39 : f32 to vector<2x64xf32>
    %218 = arith.addf %217, %216 : vector<2x64xf32>
    %219 = arith.divf %217, %218 : vector<2x64xf32>
    %220 = vector.extract_strided_slice %207 {offsets = [0, 128], sizes = [2, 64], strides = [1, 1]} : vector<2x256xf32> to vector<2x64xf32>
    %221 = math.tanh %220 : vector<2x64xf32>
    %222 = vector.extract_strided_slice %207 {offsets = [0, 192], sizes = [2, 64], strides = [1, 1]} : vector<2x256xf32> to vector<2x64xf32>
    %223 = arith.negf %222 : vector<2x64xf32>
    %224 = math.exp %223 : vector<2x64xf32>
    %cst_40 = arith.constant 1.000000e+00 : f32
    %225 = vector.broadcast %cst_40 : f32 to vector<2x64xf32>
    %226 = arith.addf %225, %224 : vector<2x64xf32>
    %227 = arith.divf %225, %226 : vector<2x64xf32>
    %228 = arith.mulf %219, %202 : vector<2x64xf32>
    %229 = arith.mulf %213, %221 : vector<2x64xf32>
    %230 = arith.addf %228, %229 : vector<2x64xf32>
    %231 = math.tanh %230 : vector<2x64xf32>
    %232 = arith.mulf %227, %231 : vector<2x64xf32>
    %c0_41 = arith.constant 0 : index
    %c0_42 = arith.constant 0 : index
    %233 = vector.load %arg9[%c0_41, %c0_42] : memref<2x64xf32, #tpu.memory_space<vmem>>, vector<2x64xf32>
    tpu.vector_store %arg9[%c0_41, %c0_42], %232 {strides = array<i32>} : memref<2x64xf32, #tpu.memory_space<vmem>>, vector<2x64xf32>,
    %c0_43 = arith.constant 0 : index
    %c0_44 = arith.constant 0 : index
    %234 = vector.load %arg4[%c0_43, %c0_44] : memref<64x32xf32, #tpu.memory_space<vmem>>, vector<64x32xf32>
    %cst_45 = arith.constant dense<0.000000e+00> : vector<2x32xf32>
    %235 = tpu.matmul %232, %234, %cst_45 {dimension_numbers = #tpu.dot_dimension_numbers<[1], [0], [0], [1], [0, 0, 1, 1], [], []>} : vector<2x64xf32>, vector<64x32xf32>, vector<2x32xf32> -> vector<2x32xf32>
    %c0_46 = arith.constant 0 : index
    %c0_47 = arith.constant 0 : index
    %236 = vector.load %arg5[%c0_46, %c0_47] : memref<1x32xf32, #tpu.memory_space<vmem>>, vector<1x32xf32>
    %237 = vector.broadcast %236 : vector<1x32xf32> to vector<2x32xf32>
    %238 = arith.addf %235, %237 : vector<2x32xf32>
    %cst_48 = arith.constant 0.000000e+00 : f32
    %239 = vector.broadcast %cst_48 : f32 to vector<2x32xf32>
    %240 = arith.maximumf %238, %239 : vector<2x32xf32>
    %c0_49 = arith.constant 0 : index
    %c0_50 = arith.constant 0 : index
    %241 = vector.load %arg6[%c0_49, %c0_50] : memref<32x5xf32, #tpu.memory_space<vmem>>, vector<32x5xf32>
    %cst_51 = arith.constant dense<0.000000e+00> : vector<2x5xf32>
    %242 = tpu.matmul %240, %241, %cst_51 {dimension_numbers = #tpu.dot_dimension_numbers<[1], [0], [0], [1], [0, 0, 1, 1], [], []>} : vector<2x32xf32>, vector<32x5xf32>, vector<2x5xf32> -> vector<2x5xf32>
    %c0_52 = arith.constant 0 : index
    %c0_53 = arith.constant 0 : index
    %243 = vector.load %arg7[%c0_52, %c0_53] : memref<1x5xf32, #tpu.memory_space<vmem>>, vector<1x5xf32>
    %244 = vector.broadcast %243 : vector<1x5xf32> to vector<2x5xf32>
    %245 = arith.addf %242, %244 : vector<2x5xf32>
    %c0_54 = arith.constant 0 : index
    %c0_55 = arith.constant 0 : index
    %246 = vector.load %arg8[%c0_54, %c0_55] : memref<2x5xf32, #tpu.memory_space<vmem>>, vector<2x5xf32>
    tpu.vector_store %arg8[%c0_54, %c0_55], %245 {strides = array<i32>} : memref<2x5xf32, #tpu.memory_space<vmem>>, vector<2x5xf32>,
    return
  }
}

</mosaic_0001>

<llo_original>
// kernel: tpu_custom_call.1
$region0: #{tpu_custom_call.1}
  #allocation0 [shape = 'u32[]', space=smem, size = 0x4, offset = 0x4, fixed_abs, tag = 'smem constant byte address 0x4 - core index']
  #allocation1 [shape = 'u32[144,128]{1,0:T(1,128)}', space=vmem, size = 0x12000, scoped, tag = 'internal scratch']
  %s0 = inlined_call_operand.hbm [shape: f32[16,64], index: 0, kind: input, shape index: {}]
  %s1 = inlined_call_operand.vmem [shape: f32[64,256], index: 1, kind: input, shape index: {}]
  %s2 = inlined_call_operand.vmem [shape: f32[1,256], index: 2, kind: input, shape index: {}]
  %s3 = inlined_call_operand.hbm [shape: f32[64,256], index: 3, kind: input, shape index: {}]
  %s4 = inlined_call_operand.vmem [shape: f32[64,32], index: 4, kind: input, shape index: {}]
  %s5 = inlined_call_operand.vmem [shape: f32[1,32], index: 5, kind: input, shape index: {}]
  %s6 = inlined_call_operand.vmem [shape: f32[32,5], index: 6, kind: input, shape index: {}]
  %s7 = inlined_call_operand.vmem [shape: f32[1,5], index: 7, kind: input, shape index: {}]
  %s8 = inlined_call_operand.hbm [shape: f32[2,5], index: 8, kind: output, shape index: {0}]
  %s9 = inlined_call_operand.hbm [shape: f32[2,64], index: 9, kind: output, shape index: {1}]
  %10 = xla_tuple %s8, %s9
  %s11 = sld [smem:[#allocation0]]
  $region58: #{tpu_custom_call.1} parent=0
    _
  %s13 = ssub.s32 1, %s11
  %s14 = scalar_select 0, %s13, %s11
  $region1: #{tpu_custom_call.1} parent=0
    #allocation2 [shape = 'u8[8192]{0}', space=vmem, size = 0x2000, scoped, tag = 'input window, operand 0, single buffered']
    #allocation3 [shape = 's32[1]{0}', space=sflag, size = 0x4, scoped, tag = 'scoped memory for tpu_custom_call.1']
    #allocation4 [shape = 's32[1]{0}', space=sflag, size = 0x4, scoped, tag = 'scoped memory for tpu_custom_call.1']
    #allocation5 [shape = 'u8[65536]{0}', space=vmem, size = 0x10000, scoped, tag = 'input window, operand 3, single buffered']
    #allocation6 [shape = 's32[1]{0}', space=sflag, size = 0x4, scoped, tag = 'scoped memory for tpu_custom_call.1']
    #allocation7 [shape = 'u8[1024]{0}', space=vmem, size = 0x400, scoped, tag = 'output window, operand 0, single buffered']
    #allocation8 [shape = 'u8[1024]{0}', space=vmem, size = 0x400, scoped, tag = 'output window, operand 1, single buffered']
    #allocation9 [shape = 's32[1]{0}', space=sflag, size = 0x4, scoped, tag = 'scoped memory for tpu_custom_call.1']
    %15 = vsyncpa [#allocation3], 0
    %16 = vsyncpa [#allocation6], 0
    %17 = vsyncpa [#allocation4], 0
    %18 = vsyncpa [#allocation9], 0
    // Predicated region
    $region2: #{tpu_custom_call.1} parent=1 // pred_check
      _
    $region3: #{tpu_custom_call.1} parent=1 // pred_check_branch
      %20 = sbr.rel (0) target = $region5
    $region4: #{tpu_custom_call.1} parent=1 // pred_region
      %s22 = ssub.s32 256, 256
      %23 = vsyncadd [#allocation3], %s22
      %s24 = sshll.u32 [#allocation2], 4
      %s25 = int_to_ptr.vmem [resolvable:$true] %s24
      %30 = dma.hbm_to_vmem [thread:$0]  %s0, 256, %s25, [#allocation3], 128, 128, 8
    $region5: #{tpu_custom_call.1} parent=1 // pred_fallthru
      _
    // Predicated region
    $region6: #{tpu_custom_call.1} parent=1 // pred_check
      _
    $region7: #{tpu_custom_call.1} parent=1 // pred_check_branch
      %32 = sbr.rel (0) target = $region9
    $region8: #{tpu_custom_call.1} parent=1 // pred_region
      _
    $region9: #{tpu_custom_call.1} parent=1 // pred_fallthru
      _
    // Predicated region
    $region10: #{tpu_custom_call.1} parent=1 // pred_check
      _
    $region11: #{tpu_custom_call.1} parent=1 // pred_check_branch
      %34 = sbr.rel (0) target = $region13
    $region12: #{tpu_custom_call.1} parent=1 // pred_region
      _
    $region13: #{tpu_custom_call.1} parent=1 // pred_fallthru
      _
    // Predicated region
    $region14: #{tpu_custom_call.1} parent=1 // pred_check
      _
    $region15: #{tpu_custom_call.1} parent=1 // pred_check_branch
      %36 = sbr.rel (0) target = $region17
    $region16: #{tpu_custom_call.1} parent=1 // pred_region
      %s38 = ssub.s32 2048, 2048
      %39 = vsyncadd [#allocation6], %s38
      %s40 = sshll.u32 [#allocation5], 4
      %s41 = int_to_ptr.vmem [resolvable:$true] %s40
      %46 = dma.hbm_to_vmem [thread:$0]  %s3, 2048, %s41, [#allocation6], 256, 256, 16
    $region17: #{tpu_custom_call.1} parent=1 // pred_fallthru
      _
    // Predicated region
    $region18: #{tpu_custom_call.1} parent=1 // pred_check
      _
    $region19: #{tpu_custom_call.1} parent=1 // pred_check_branch
      %48 = sbr.rel (0) target = $region21
    $region20: #{tpu_custom_call.1} parent=1 // pred_region
      _
    $region21: #{tpu_custom_call.1} parent=1 // pred_fallthru
      _
    // Predicated region
    $region22: #{tpu_custom_call.1} parent=1 // pred_check
      _
    $region23: #{tpu_custom_call.1} parent=1 // pred_check_branch
      %50 = sbr.rel (0) target = $region25
    $region24: #{tpu_custom_call.1} parent=1 // pred_region
      _
    $region25: #{tpu_custom_call.1} parent=1 // pred_fallthru
      _
    // Predicated region
    $region26: #{tpu_custom_call.1} parent=1 // pred_check
      _
    $region27: #{tpu_custom_call.1} parent=1 // pred_check_branch
      %52 = sbr.rel (0) target = $region29
    $region28: #{tpu_custom_call.1} parent=1 // pred_region
      _
    $region29: #{tpu_custom_call.1} parent=1 // pred_fallthru
      _
    // Predicated region
    $region30: #{tpu_custom_call.1} parent=1 // pred_check
      _
    $region31: #{tpu_custom_call.1} parent=1 // pred_check_branch
      %54 = sbr.rel (0) target = $region33
    $region32: #{tpu_custom_call.1} parent=1 // pred_region
      _
    $region33: #{tpu_custom_call.1} parent=1 // pred_fallthru
      _
    // Predicated region
    $region34: #{tpu_custom_call.1} parent=1 // pred_check
      _
    $region35: #{tpu_custom_call.1} parent=1 // pred_check_branch
      %56 = sbr.rel (0) target = $region37
    $region36: #{tpu_custom_call.1} parent=1 // pred_region
      %57 = dma.done [#allocation3], 256
    $region37: #{tpu_custom_call.1} parent=1 // pred_fallthru
      _
    // Predicated region
    $region38: #{tpu_custom_call.1} parent=1 // pred_check
      _
    $region39: #{tpu_custom_call.1} parent=1 // pred_check_branch
      %59 = sbr.rel (0) target = $region41
    $region40: #{tpu_custom_call.1} parent=1 // pred_region
      %60 = dma.done [#allocation6], 2048
    $region41: #{tpu_custom_call.1} parent=1 // pred_fallthru
      _
    %v61 = vld [vmem:[#allocation2] sm:$0xff]
    %v62 = vld [vmem:[#allocation2 + $0x8] sm:$0xff]
    %v63 = vld [vmem:[%s1] sm:$0xff]
    %v64 = vld [vmem:[%s1 + $0x8] sm:$0xff]
    %v65 = vld [vmem:[%s1 + $0x10] sm:$0xff]
    %v66 = vld [vmem:[%s1 + $0x18] sm:$0xff]
    %v67 = vld [vmem:[%s1 + $0x20] sm:$0xff]
    %v68 = vld [vmem:[%s1 + $0x28] sm:$0xff]
    %v69 = vld [vmem:[%s1 + $0x30] sm:$0xff]
    %v70 = vld [vmem:[%s1 + $0x38] sm:$0xff]
    %v71 = vld [vmem:[%s1 + $0x40] sm:$0xff]
    %v72 = vld [vmem:[%s1 + $0x48] sm:$0xff]
    %v73 = vld [vmem:[%s1 + $0x50] sm:$0xff]
    %v74 = vld [vmem:[%s1 + $0x58] sm:$0xff]
    %v75 = vld [vmem:[%s1 + $0x60] sm:$0xff]
    %v76 = vld [vmem:[%s1 + $0x68] sm:$0xff]
    %v77 = vld [vmem:[%s1 + $0x70] sm:$0xff]
    %v78 = vld [vmem:[%s1 + $0x78] sm:$0xff]
    %v79 = vld [vmem:[%s2] sm:$0x3]
    %v81 = vlaneseq
    %v82 = vshrl.u32 %v81, 7
    %v83 = vsub.s32 0, %v82
    %v84 = vrot.slane %v79, %v83
    %v85 = vlaneseq
    %v86 = vshrl.u32 %v85, 7
    %v87 = vsub.s32 1, %v86
    %v88 = vrot.slane %v79, %v87
    %vm91 = vcmask 523264
    %v93 = vsel %vm91, %v61, 0
    %v96 = vsel %vm91, %v62, 0
    %98 = vmatprep.subr.mxu0 %v64
    %99 = vmatpush1.msra.mxu0 %v63
    %100 = vmatprep.subr.mxu0 %v66
    %101 = vmatpush1.msra.mxu0 %v65
    %102 = vmatprep.subr.mxu0 %v68
    %103 = vmatpush1.msra.mxu0 %v67
    %104 = vmatprep.subr.mxu0 %v70
    %105 = vmatpush1.msra.mxu0 %v69
    %106 = vmatprep.subr.mxu0 %v72
    %107 = vmatpush1.msra.mxu0 %v71
    %108 = vmatprep.subr.mxu0 %v74
    %109 = vmatpush1.msra.mxu0 %v73
    %110 = vmatprep.subr.mxu0 %v76
    %111 = vmatpush1.msra.mxu0 %v75
    %112 = vmatprep.subr.mxu0 %v78
    %113 = vmatpush1.msra.mxu0 %v77
    %114 = vmatprep.subr.mxu0 0.0
    %115 = vmatpush1.msra.mxu0 0.0
    %116 = vmatprep.subr.mxu0 0.0
    %117 = vmatpush1.msra.mxu0 0.0
    %118 = vmatprep.subr.mxu0 0.0
    %119 = vmatpush1.msra.mxu0 0.0
    %120 = vmatprep.subr.mxu0 0.0
    %121 = vmatpush1.msra.mxu0 0.0
    %122 = vmatprep.subr.mxu0 0.0
    %123 = vmatpush1.msra.mxu0 0.0
    %124 = vmatprep.subr.mxu0 0.0
    %125 = vmatpush1.msra.mxu0 0.0
    %126 = vmatprep.subr.mxu0 0.0
    %127 = vmatpush1.msra.mxu0 0.0
    %128 = vmatprep.subr.mxu0 0.0
    %129 = vmatpush1.msra.mxu0 0.0
    %130 = vmatprep.subr.mxu0 0.0
    %131 = vmatpush1.msra.mxu0 0.0
    %132 = vmatprep.subr.mxu0 0.0
    %133 = vmatpush1.msra.mxu0 0.0
    %134 = vmatprep.subr.mxu0 0.0
    %135 = vmatpush1.msra.mxu0 0.0
    %136 = vmatprep.subr.mxu0 0.0
    %137 = vmatpush1.msra.mxu0 0.0
    %138 = vmatprep.subr.mxu0 0.0
    %139 = vmatpush1.msra.mxu0 0.0
    %140 = vmatprep.subr.mxu0 0.0
    %141 = vmatpush1.msra.mxu0 0.0
    %142 = vmatprep.subr.mxu0 0.0
    %143 = vmatpush1.msra.mxu0 0.0
    %144 = vmatprep.subr.mxu0 0.0
    %145 = vmatpush1.msra.mxu0 0.0
    %146 = vmatprep.subr.mxu0 0.0
    %147 = vmatpush1.msra.mxu0 0.0
    %148 = vmatprep.subr.mxu0 0.0
    %149 = vmatpush1.msra.mxu0 0.0
    %150 = vmatprep.subr.mxu0 0.0
    %151 = vmatpush1.msra.mxu0 0.0
    %152 = vmatprep.subr.mxu0 0.0
    %153 = vmatpush1.msra.mxu0 0.0
    %154 = vmatprep.subr.mxu0 0.0
    %155 = vmatpush1.msra.mxu0 0.0
    %156 = vmatprep.subr.mxu0 0.0
    %157 = vmatpush1.msra.mxu0 0.0
    %158 = vmatprep.subr.mxu0 0.0
    %159 = vmatpush1.msra.mxu0 0.0
    %160 = vmatprep.subr.mxu0 0.0
    %161 = vmatpush1.msra.mxu0 0.0
    %162 = vmatprep.mubr.f32.mxu0 0.0
    %163 = vmatmul.mubr.f32.gmra.mrb[0].mxu0 %v93
    %v164 = vpop.f32.mrb[0].mxu0
    %v165 = vadd.f32 %v84, %v164
    %v166 = vpop.f32.mrb[0].mxu0
    %v167 = vadd.f32 %v88, %v166
    %168 = vmatprep.mubr.f32.mxu0 0.0
    %169 = vmatmul.mubr.f32.gmra.mrb[0].mxu0 %v96
    %v170 = vpop.f32.mrb[0].mxu0
    %v171 = vadd.f32 %v84, %v170
    %v172 = vpop.f32.mrb[0].mxu0
    %v173 = vadd.f32 %v88, %v172
    %174 = vdwg.mxu0
    %v175 = vld [vmem:[#allocation5] sm:$0xff]
    %v176 = vld [vmem:[#allocation5 + $0x8] sm:$0xff]
    %v177 = vld [vmem:[#allocation5 + $0x10] sm:$0xff]
    %v178 = vld [vmem:[#allocation5 + $0x18] sm:$0xff]
    %v179 = vld [vmem:[#allocation5 + $0x20] sm:$0xff]
    %v180 = vld [vmem:[#allocation5 + $0x28] sm:$0xff]
    %v181 = vld [vmem:[#allocation5 + $0x30] sm:$0xff]
    %v182 = vld [vmem:[#allocation5 + $0x38] sm:$0xff]
    %v183 = vld [vmem:[#allocation5 + $0x40] sm:$0xff]
    %v184 = vld [vmem:[#allocation5 + $0x48] sm:$0xff]
    %v185 = vld [vmem:[#allocation5 + $0x50] sm:$0xff]
    %v186 = vld [vmem:[#allocation5 + $0x58] sm:$0xff]
    %v187 = vld [vmem:[#allocation5 + $0x60] sm:$0xff]
    %v188 = vld [vmem:[#allocation5 + $0x68] sm:$0xff]
    %v189 = vld [vmem:[#allocation5 + $0x70] sm:$0xff]
    %v190 = vld [vmem:[#allocation5 + $0x78] sm:$0xff]
    %v192 = vsel %vm91, 0.0, 0
    %194 = vmatprep.subr.mxu0 %v176
    %195 = vmatpush1.msra.mxu0 %v175
    %196 = vmatprep.subr.mxu0 %v178
    %197 = vmatpush1.msra.mxu0 %v177
    %198 = vmatprep.subr.mxu0 %v180
    %199 = vmatpush1.msra.mxu0 %v179
    %200 = vmatprep.subr.mxu0 %v182
    %201 = vmatpush1.msra.mxu0 %v181
    %202 = vmatprep.subr.mxu0 %v184
    %203 = vmatpush1.msra.mxu0 %v183
    %204 = vmatprep.subr.mxu0 %v186
    %205 = vmatpush1.msra.mxu0 %v185
    %206 = vmatprep.subr.mxu0 %v188
    %207 = vmatpush1.msra.mxu0 %v187
    %208 = vmatprep.subr.mxu0 %v190
    %209 = vmatpush1.msra.mxu0 %v189
    %210 = vmatprep.subr.mxu0 0.0
    %211 = vmatpush1.msra.mxu0 0.0
    %212 = vmatprep.subr.mxu0 0.0
    %213 = vmatpush1.msra.mxu0 0.0
    %214 = vmatprep.subr.mxu0 0.0
    %215 = vmatpush1.msra.mxu0 0.0
    %216 = vmatprep.subr.mxu0 0.0
    %217 = vmatpush1.msra.mxu0 0.0
    %218 = vmatprep.subr.mxu0 0.0
    %219 = vmatpush1.msra.mxu0 0.0
    %220 = vmatprep.subr.mxu0 0.0
    %221 = vmatpush1.msra.mxu0 0.0
    %222 = vmatprep.subr.mxu0 0.0
    %223 = vmatpush1.msra.mxu0 0.0
    %224 = vmatprep.subr.mxu0 0.0
    %225 = vmatpush1.msra.mxu0 0.0
    %226 = vmatprep.subr.mxu0 0.0
    %227 = vmatpush1.msra.mxu0 0.0
    %228 = vmatprep.subr.mxu0 0.0
    %229 = vmatpush1.msra.mxu0 0.0
    %230 = vmatprep.subr.mxu0 0.0
    %231 = vmatpush1.msra.mxu0 0.0
    %232 = vmatprep.subr.mxu0 0.0
    %233 = vmatpush1.msra.mxu0 0.0
    %234 = vmatprep.subr.mxu0 0.0
    %235 = vmatpush1.msra.mxu0 0.0
    %236 = vmatprep.subr.mxu0 0.0
    %237 = vmatpush1.msra.mxu0 0.0
    %238 = vmatprep.subr.mxu0 0.0
    %239 = vmatpush1.msra.mxu0 0.0
    %240 = vmatprep.subr.mxu0 0.0
    %241 = vmatpush1.msra.mxu0 0.0
    %242 = vmatprep.subr.mxu0 0.0
    %243 = vmatpush1.msra.mxu0 0.0
    %244 = vmatprep.subr.mxu0 0.0
    %245 = vmatpush1.msra.mxu0 0.0
    %246 = vmatprep.subr.mxu0 0.0
    %247 = vmatpush1.msra.mxu0 0.0
    %248 = vmatprep.subr.mxu0 0.0
    %249 = vmatpush1.msra.mxu0 0.0
    %250 = vmatprep.subr.mxu0 0.0
    %251 = vmatpush1.msra.mxu0 0.0
    %252 = vmatprep.subr.mxu0 0.0
    %253 = vmatpush1.msra.mxu0 0.0
    %254 = vmatprep.subr.mxu0 0.0
    %255 = vmatpush1.msra.mxu0 0.0
    %256 = vmatprep.subr.mxu0 0.0
    %257 = vmatpush1.msra.mxu0 0.0
    %258 = vmatprep.mubr.f32.mxu0 0.0
    %259 = vmatmul.mubr.f32.gmra.mrb[0].mxu0 %v192
    %v260 = vpop.f32.mrb[0].mxu0
    %v261 = vadd.f32 0.0, %v260
    %v262 = vpop.f32.mrb[0].mxu0
    %v263 = vadd.f32 0.0, %v262
    %264 = vdwg.mxu0
    %v265 = vadd.f32 %v165, %v261
    %v266 = vadd.f32 %v167, %v263
    %v267 = vxor.u32 %v265, 2147483648
    %v268 = vmul.f32 %v267, 1.442695
    %v269 = vpow.pop %v268
    %v270 = vadd.f32 %v269, 1.0
    %v271 = vrcp.pop %v270
    %v272 = vmul.f32 1.0, %v271
    %v273 = vtanh.pop %v266
    %v274 = vxor.u32 %v266, 2147483648
    %v275 = vmul.f32 %v274, 1.442695
    %v276 = vpow.pop %v275
    %v277 = vadd.f32 %v276, 1.0
    %v278 = vrcp.pop %v277
    %v279 = vmul.f32 1.0, %v278
    %v280 = vmul.f32 %v272, 0.0
    %v281 = vmul.f32 %v272, %v273
    %283 = vrot.lane.b32.xlu0 %v281, 64
    %v284 = vpop.permute.xlu0 %283
    %v286 = vadd.f32 %v280, %v284
    %v287 = vtanh.pop %v286
    %v288 = vmul.f32 %v279, %v287
    %290 = vrot.lane.b32.xlu0 %v288, 64
    %v291 = vpop.permute.xlu0 %290
    %v292 = vsel %vm91, %v291, 0
    %294 = vmatprep.subr.mxu0 %v176
    %295 = vmatpush1.msra.mxu0 %v175
    %296 = vmatprep.subr.mxu0 %v178
    %297 = vmatpush1.msra.mxu0 %v177
    %298 = vmatprep.subr.mxu0 %v180
    %299 = vmatpush1.msra.mxu0 %v179
    %300 = vmatprep.subr.mxu0 %v182
    %301 = vmatpush1.msra.mxu0 %v181
    %302 = vmatprep.subr.mxu0 %v184
    %303 = vmatpush1.msra.mxu0 %v183
    %304 = vmatprep.subr.mxu0 %v186
    %305 = vmatpush1.msra.mxu0 %v185
    %306 = vmatprep.subr.mxu0 %v188
    %307 = vmatpush1.msra.mxu0 %v187
    %308 = vmatprep.subr.mxu0 %v190
    %309 = vmatpush1.msra.mxu0 %v189
    %310 = vmatprep.subr.mxu0 0.0
    %311 = vmatpush1.msra.mxu0 0.0
    %312 = vmatprep.subr.mxu0 0.0
    %313 = vmatpush1.msra.mxu0 0.0
    %314 = vmatprep.subr.mxu0 0.0
    %315 = vmatpush1.msra.mxu0 0.0
    %316 = vmatprep.subr.mxu0 0.0
    %317 = vmatpush1.msra.mxu0 0.0
    %318 = vmatprep.subr.mxu0 0.0
    %319 = vmatpush1.msra.mxu0 0.0
    %320 = vmatprep.subr.mxu0 0.0
    %321 = vmatpush1.msra.mxu0 0.0
    %322 = vmatprep.subr.mxu0 0.0
    %323 = vmatpush1.msra.mxu0 0.0
    %324 = vmatprep.subr.mxu0 0.0
    %325 = vmatpush1.msra.mxu0 0.0
    %326 = vmatprep.subr.mxu0 0.0
    %327 = vmatpush1.msra.mxu0 0.0
    %328 = vmatprep.subr.mxu0 0.0
    %329 = vmatpush1.msra.mxu0 0.0
    %330 = vmatprep.subr.mxu0 0.0
    %331 = vmatpush1.msra.mxu0 0.0
    %332 = vmatprep.subr.mxu0 0.0
    %333 = vmatpush1.msra.mxu0 0.0
    %334 = vmatprep.subr.mxu0 0.0
    %335 = vmatpush1.msra.mxu0 0.0
    %336 = vmatprep.subr.mxu0 0.0
    %337 = vmatpush1.msra.mxu0 0.0
    %338 = vmatprep.subr.mxu0 0.0
    %339 = vmatpush1.msra.mxu0 0.0
    %340 = vmatprep.subr.mxu0 0.0
    %341 = vmatpush1.msra.mxu0 0.0
    %342 = vmatprep.subr.mxu0 0.0
    %343 = vmatpush1.msra.mxu0 0.0
    %344 = vmatprep.subr.mxu0 0.0
    %345 = vmatpush1.msra.mxu0 0.0
    %346 = vmatprep.subr.mxu0 0.0
    %347 = vmatpush1.msra.mxu0 0.0
    %348 = vmatprep.subr.mxu0 0.0
    %349 = vmatpush1.msra.mxu0 0.0
    %350 = vmatprep.subr.mxu0 0.0
    %351 = vmatpush1.msra.mxu0 0.0
    %352 = vmatprep.subr.mxu0 0.0
    %353 = vmatpush1.msra.mxu0 0.0
    %354 = vmatprep.subr.mxu0 0.0
    %355 = vmatpush1.msra.mxu0 0.0
    %356 = vmatprep.subr.mxu0 0.0
    %357 = vmatpush1.msra.mxu0 0.0
    %358 = vmatprep.mubr.f32.mxu0 0.0
    %359 = vmatmul.mubr.f32.gmra.mrb[0].mxu0 %v292
    %v360 = vpop.f32.mrb[0].mxu0
    %v361 = vadd.f32 0.0, %v360
    %v362 = vpop.f32.mrb[0].mxu0
    %v363 = vadd.f32 0.0, %v362
    %364 = vdwg.mxu0
    %v367 = vrot.slane %v361, 6
    %v368 = vrot.slane %v363, 6
    %v371 = vadd.f32 %v165, %v367
    %v372 = vadd.f32 %v167, %v368
    %v373 = vxor.u32 %v371, 2147483648
    %v374 = vmul.f32 %v373, 1.442695
    %v375 = vpow.pop %v374
    %v376 = vadd.f32 %v375, 1.0
    %v377 = vrcp.pop %v376
    %v378 = vmul.f32 1.0, %v377
    %v379 = vtanh.pop %v372
    %v380 = vxor.u32 %v372, 2147483648
    %v381 = vmul.f32 %v380, 1.442695
    %v382 = vpow.pop %v381
    %v383 = vadd.f32 %v382, 1.0
    %v384 = vrcp.pop %v383
    %v385 = vmul.f32 1.0, %v384
    %v387 = vrot.slane %v286, 6
    %v389 = vmul.f32 %v378, %v387
    %v390 = vmul.f32 %v378, %v379
    %392 = vrot.lane.b32.xlu0 %v390, 64
    %v393 = vpop.permute.xlu0 %392
    %v395 = vadd.f32 %v389, %v393
    %v396 = vtanh.pop %v395
    %v397 = vmul.f32 %v385, %v396
    %v399 = vrot.slane %v397, 2
    %400 = vrot.lane.b32.xlu0 %v399, 64
    %v401 = vpop.permute.xlu0 %400
    %v402 = vsel %vm91, %v401, 0
    %404 = vmatprep.subr.mxu0 %v176
    %405 = vmatpush1.msra.mxu0 %v175
    %406 = vmatprep.subr.mxu0 %v178
    %407 = vmatpush1.msra.mxu0 %v177
    %408 = vmatprep.subr.mxu0 %v180
    %409 = vmatpush1.msra.mxu0 %v179
    %410 = vmatprep.subr.mxu0 %v182
    %411 = vmatpush1.msra.mxu0 %v181
    %412 = vmatprep.subr.mxu0 %v184
    %413 = vmatpush1.msra.mxu0 %v183
    %414 = vmatprep.subr.mxu0 %v186
    %415 = vmatpush1.msra.mxu0 %v185
    %416 = vmatprep.subr.mxu0 %v188
    %417 = vmatpush1.msra.mxu0 %v187
    %418 = vmatprep.subr.mxu0 %v190
    %419 = vmatpush1.msra.mxu0 %v189
    %420 = vmatprep.subr.mxu0 0.0
    %421 = vmatpush1.msra.mxu0 0.0
    %422 = vmatprep.subr.mxu0 0.0
    %423 = vmatpush1.msra.mxu0 0.0
    %424 = vmatprep.subr.mxu0 0.0
    %425 = vmatpush1.msra.mxu0 0.0
    %426 = vmatprep.subr.mxu0 0.0
    %427 = vmatpush1.msra.mxu0 0.0
    %428 = vmatprep.subr.mxu0 0.0
    %429 = vmatpush1.msra.mxu0 0.0
    %430 = vmatprep.subr.mxu0 0.0
    %431 = vmatpush1.msra.mxu0 0.0
    %432 = vmatprep.subr.mxu0 0.0
    %433 = vmatpush1.msra.mxu0 0.0
    %434 = vmatprep.subr.mxu0 0.0
    %435 = vmatpush1.msra.mxu0 0.0
    %436 = vmatprep.subr.mxu0 0.0
    %437 = vmatpush1.msra.mxu0 0.0
    %438 = vmatprep.subr.mxu0 0.0
    %439 = vmatpush1.msra.mxu0 0.0
    %440 = vmatprep.subr.mxu0 0.0
    %441 = vmatpush1.msra.mxu0 0.0
    %442 = vmatprep.subr.mxu0 0.0
    %443 = vmatpush1.msra.mxu0 0.0
    %444 = vmatprep.subr.mxu0 0.0
    %445 = vmatpush1.msra.mxu0 0.0
    %446 = vmatprep.subr.mxu0 0.0
    %447 = vmatpush1.msra.mxu0 0.0
    %448 = vmatprep.subr.mxu0 0.0
    %449 = vmatpush1.msra.mxu0 0.0
    %450 = vmatprep.subr.mxu0 0.0
    %451 = vmatpush1.msra.mxu0 0.0
    %452 = vmatprep.subr.mxu0 0.0
    %453 = vmatpush1.msra.mxu0 0.0
    %454 = vmatprep.subr.mxu0 0.0
    %455 = vmatpush1.msra.mxu0 0.0
    %456 = vmatprep.subr.mxu0 0.0
    %457 = vmatpush1.msra.mxu0 0.0
    %458 = vmatprep.subr.mxu0 0.0
    %459 = vmatpush1.msra.mxu0 0.0
    %460 = vmatprep.subr.mxu0 0.0
    %461 = vmatpush1.msra.mxu0 0.0
    %462 = vmatprep.subr.mxu0 0.0
    %463 = vmatpush1.msra.mxu0 0.0
    %464 = vmatprep.subr.mxu0 0.0
    %465 = vmatpush1.msra.mxu0 0.0
    %466 = vmatprep.subr.mxu0 0.0
    %467 = vmatpush1.msra.mxu0 0.0
    %468 = vmatprep.mubr.f32.mxu0 0.0
    %469 = vmatmul.mubr.f32.gmra.mrb[0].mxu0 %v402
    %v470 = vpop.f32.mrb[0].mxu0
    %v471 = vadd.f32 0.0, %v470
    %v472 = vpop.f32.mrb[0].mxu0
    %v473 = vadd.f32 0.0, %v472
    %474 = vdwg.mxu0
    %v477 = vrot.slane %v471, 4
    %v478 = vrot.slane %v473, 4
    %v481 = vadd.f32 %v165, %v477
    %v482 = vadd.f32 %v167, %v478
    %v483 = vxor.u32 %v481, 2147483648
    %v484 = vmul.f32 %v483, 1.442695
    %v485 = vpow.pop %v484
    %v486 = vadd.f32 %v485, 1.0
    %v487 = vrcp.pop %v486
    %v488 = vmul.f32 1.0, %v487
    %v489 = vtanh.pop %v482
    %v490 = vxor.u32 %v482, 2147483648
    %v491 = vmul.f32 %v490, 1.442695
    %v492 = vpow.pop %v491
    %v493 = vadd.f32 %v492, 1.0
    %v494 = vrcp.pop %v493
    %v495 = vmul.f32 1.0, %v494
    %v497 = vrot.slane %v395, 6
    %v499 = vmul.f32 %v488, %v497
    %v500 = vmul.f32 %v488, %v489
    %502 = vrot.lane.b32.xlu0 %v500, 64
    %v503 = vpop.permute.xlu0 %502
    %v505 = vadd.f32 %v499, %v503
    %v506 = vtanh.pop %v505
    %v507 = vmul.f32 %v495, %v506
    %v509 = vrot.slane %v507, 4
    %510 = vrot.lane.b32.xlu0 %v509, 64
    %v511 = vpop.permute.xlu0 %510
    %v512 = vsel %vm91, %v511, 0
    %514 = vmatprep.subr.mxu0 %v176
    %515 = vmatpush1.msra.mxu0 %v175
    %516 = vmatprep.subr.mxu0 %v178
    %517 = vmatpush1.msra.mxu0 %v177
    %518 = vmatprep.subr.mxu0 %v180
    %519 = vmatpush1.msra.mxu0 %v179
    %520 = vmatprep.subr.mxu0 %v182
    %521 = vmatpush1.msra.mxu0 %v181
    %522 = vmatprep.subr.mxu0 %v184
    %523 = vmatpush1.msra.mxu0 %v183
    %524 = vmatprep.subr.mxu0 %v186
    %525 = vmatpush1.msra.mxu0 %v185
    %526 = vmatprep.subr.mxu0 %v188
    %527 = vmatpush1.msra.mxu0 %v187
    %528 = vmatprep.subr.mxu0 %v190
    %529 = vmatpush1.msra.mxu0 %v189
    %530 = vmatprep.subr.mxu0 0.0
    %531 = vmatpush1.msra.mxu0 0.0
    %532 = vmatprep.subr.mxu0 0.0
    %533 = vmatpush1.msra.mxu0 0.0
    %534 = vmatprep.subr.mxu0 0.0
    %535 = vmatpush1.msra.mxu0 0.0
    %536 = vmatprep.subr.mxu0 0.0
    %537 = vmatpush1.msra.mxu0 0.0
    %538 = vmatprep.subr.mxu0 0.0
    %539 = vmatpush1.msra.mxu0 0.0
    %540 = vmatprep.subr.mxu0 0.0
    %541 = vmatpush1.msra.mxu0 0.0
    %542 = vmatprep.subr.mxu0 0.0
    %543 = vmatpush1.msra.mxu0 0.0
    %544 = vmatprep.subr.mxu0 0.0
    %545 = vmatpush1.msra.mxu0 0.0
    %546 = vmatprep.subr.mxu0 0.0
    %547 = vmatpush1.msra.mxu0 0.0
    %548 = vmatprep.subr.mxu0 0.0
    %549 = vmatpush1.msra.mxu0 0.0
    %550 = vmatprep.subr.mxu0 0.0
    %551 = vmatpush1.msra.mxu0 0.0
    %552 = vmatprep.subr.mxu0 0.0
    %553 = vmatpush1.msra.mxu0 0.0
    %554 = vmatprep.subr.mxu0 0.0
    %555 = vmatpush1.msra.mxu0 0.0
    %556 = vmatprep.subr.mxu0 0.0
    %557 = vmatpush1.msra.mxu0 0.0
    %558 = vmatprep.subr.mxu0 0.0
    %559 = vmatpush1.msra.mxu0 0.0
    %560 = vmatprep.subr.mxu0 0.0
    %561 = vmatpush1.msra.mxu0 0.0
    %562 = vmatprep.subr.mxu0 0.0
    %563 = vmatpush1.msra.mxu0 0.0
    %564 = vmatprep.subr.mxu0 0.0
    %565 = vmatpush1.msra.mxu0 0.0
    %566 = vmatprep.subr.mxu0 0.0
    %567 = vmatpush1.msra.mxu0 0.0
    %568 = vmatprep.subr.mxu0 0.0
    %569 = vmatpush1.msra.mxu0 0.0
    %570 = vmatprep.subr.mxu0 0.0
    %571 = vmatpush1.msra.mxu0 0.0
    %572 = vmatprep.subr.mxu0 0.0
    %573 = vmatpush1.msra.mxu0 0.0
    %574 = vmatprep.subr.mxu0 0.0
    %575 = vmatpush1.msra.mxu0 0.0
    %576 = vmatprep.subr.mxu0 0.0
    %577 = vmatpush1.msra.mxu0 0.0
    %578 = vmatprep.mubr.f32.mxu0 0.0
    %579 = vmatmul.mubr.f32.gmra.mrb[0].mxu0 %v512
    %v580 = vpop.f32.mrb[0].mxu0
    %v581 = vadd.f32 0.0, %v580
    %v582 = vpop.f32.mrb[0].mxu0
    %v583 = vadd.f32 0.0, %v582
    %584 = vdwg.mxu0
    %v587 = vrot.slane %v581, 2
    %v588 = vrot.slane %v583, 2
    %v591 = vadd.f32 %v165, %v587
    %v592 = vadd.f32 %v167, %v588
    %v593 = vxor.u32 %v591, 2147483648
    %v594 = vmul.f32 %v593, 1.442695
    %v595 = vpow.pop %v594
    %v596 = vadd.f32 %v595, 1.0
    %v597 = vrcp.pop %v596
    %v598 = vmul.f32 1.0, %v597
    %v599 = vtanh.pop %v592
    %v600 = vxor.u32 %v592, 2147483648
    %v601 = vmul.f32 %v600, 1.442695
    %v602 = vpow.pop %v601
    %v603 = vadd.f32 %v602, 1.0
    %v604 = vrcp.pop %v603
    %v605 = vmul.f32 1.0, %v604
    %v607 = vrot.slane %v505, 6
    %v609 = vmul.f32 %v598, %v607
    %v610 = vmul.f32 %v598, %v599
    %612 = vrot.lane.b32.xlu0 %v610, 64
    %v613 = vpop.permute.xlu0 %612
    %v615 = vadd.f32 %v609, %v613
    %v616 = vtanh.pop %v615
    %v617 = vmul.f32 %v605, %v616
    %v619 = vrot.slane %v617, 6
    %620 = vrot.lane.b32.xlu0 %v619, 64
    %v621 = vpop.permute.xlu0 %620
    %v622 = vsel %vm91, %v621, 0
    %624 = vmatprep.subr.mxu0 %v176
    %625 = vmatpush1.msra.mxu0 %v175
    %626 = vmatprep.subr.mxu0 %v178
    %627 = vmatpush1.msra.mxu0 %v177
    %628 = vmatprep.subr.mxu0 %v180
    %629 = vmatpush1.msra.mxu0 %v179
    %630 = vmatprep.subr.mxu0 %v182
    %631 = vmatpush1.msra.mxu0 %v181
    %632 = vmatprep.subr.mxu0 %v184
    %633 = vmatpush1.msra.mxu0 %v183
    %634 = vmatprep.subr.mxu0 %v186
    %635 = vmatpush1.msra.mxu0 %v185
    %636 = vmatprep.subr.mxu0 %v188
    %637 = vmatpush1.msra.mxu0 %v187
    %638 = vmatprep.subr.mxu0 %v190
    %639 = vmatpush1.msra.mxu0 %v189
    %640 = vmatprep.subr.mxu0 0.0
    %641 = vmatpush1.msra.mxu0 0.0
    %642 = vmatprep.subr.mxu0 0.0
    %643 = vmatpush1.msra.mxu0 0.0
    %644 = vmatprep.subr.mxu0 0.0
    %645 = vmatpush1.msra.mxu0 0.0
    %646 = vmatprep.subr.mxu0 0.0
    %647 = vmatpush1.msra.mxu0 0.0
    %648 = vmatprep.subr.mxu0 0.0
    %649 = vmatpush1.msra.mxu0 0.0
    %650 = vmatprep.subr.mxu0 0.0
    %651 = vmatpush1.msra.mxu0 0.0
    %652 = vmatprep.subr.mxu0 0.0
    %653 = vmatpush1.msra.mxu0 0.0
    %654 = vmatprep.subr.mxu0 0.0
    %655 = vmatpush1.msra.mxu0 0.0
    %656 = vmatprep.subr.mxu0 0.0
    %657 = vmatpush1.msra.mxu0 0.0
    %658 = vmatprep.subr.mxu0 0.0
    %659 = vmatpush1.msra.mxu0 0.0
    %660 = vmatprep.subr.mxu0 0.0
    %661 = vmatpush1.msra.mxu0 0.0
    %662 = vmatprep.subr.mxu0 0.0
    %663 = vmatpush1.msra.mxu0 0.0
    %664 = vmatprep.subr.mxu0 0.0
    %665 = vmatpush1.msra.mxu0 0.0
    %666 = vmatprep.subr.mxu0 0.0
    %667 = vmatpush1.msra.mxu0 0.0
    %668 = vmatprep.subr.mxu0 0.0
    %669 = vmatpush1.msra.mxu0 0.0
    %670 = vmatprep.subr.mxu0 0.0
    %671 = vmatpush1.msra.mxu0 0.0
    %672 = vmatprep.subr.mxu0 0.0
    %673 = vmatpush1.msra.mxu0 0.0
    %674 = vmatprep.subr.mxu0 0.0
    %675 = vmatpush1.msra.mxu0 0.0
    %676 = vmatprep.subr.mxu0 0.0
    %677 = vmatpush1.msra.mxu0 0.0
    %678 = vmatprep.subr.mxu0 0.0
    %679 = vmatpush1.msra.mxu0 0.0
    %680 = vmatprep.subr.mxu0 0.0
    %681 = vmatpush1.msra.mxu0 0.0
    %682 = vmatprep.subr.mxu0 0.0
    %683 = vmatpush1.msra.mxu0 0.0
    %684 = vmatprep.subr.mxu0 0.0
    %685 = vmatpush1.msra.mxu0 0.0
    %686 = vmatprep.subr.mxu0 0.0
    %687 = vmatpush1.msra.mxu0 0.0
    %688 = vmatprep.mubr.f32.mxu0 0.0
    %689 = vmatmul.mubr.f32.gmra.mrb[0].mxu0 %v622
    %v690 = vpop.f32.mrb[0].mxu0
    %v691 = vadd.f32 0.0, %v690
    %v692 = vpop.f32.mrb[0].mxu0
    %v693 = vadd.f32 0.0, %v692
    %694 = vdwg.mxu0
    %v695 = vadd.f32 %v171, %v691
    %v696 = vadd.f32 %v173, %v693
    %v697 = vxor.u32 %v695, 2147483648
    %v698 = vmul.f32 %v697, 1.442695
    %v699 = vpow.pop %v698
    %v700 = vadd.f32 %v699, 1.0
    %v701 = vrcp.pop %v700
    %v702 = vmul.f32 1.0, %v701
    %v703 = vtanh.pop %v696
    %v704 = vxor.u32 %v696, 2147483648
    %v705 = vmul.f32 %v704, 1.442695
    %v706 = vpow.pop %v705
    %v707 = vadd.f32 %v706, 1.0
    %v708 = vrcp.pop %v707
    %v709 = vmul.f32 1.0, %v708
    %v711 = vrot.slane %v615, 6
    %v713 = vmul.f32 %v702, %v711
    %v714 = vmul.f32 %v702, %v703
    %716 = vrot.lane.b32.xlu0 %v714, 64
    %v717 = vpop.permute.xlu0 %716
    %v719 = vadd.f32 %v713, %v717
    %v720 = vtanh.pop %v719
    %v721 = vmul.f32 %v709, %v720
    %723 = vrot.lane.b32.xlu0 %v721, 64
    %v724 = vpop.permute.xlu0 %723
    %v725 = vsel %vm91, %v724, 0
    %727 = vmatprep.subr.mxu0 %v176
    %728 = vmatpush1.msra.mxu0 %v175
    %729 = vmatprep.subr.mxu0 %v178
    %730 = vmatpush1.msra.mxu0 %v177
    %731 = vmatprep.subr.mxu0 %v180
    %732 = vmatpush1.msra.mxu0 %v179
    %733 = vmatprep.subr.mxu0 %v182
    %734 = vmatpush1.msra.mxu0 %v181
    %735 = vmatprep.subr.mxu0 %v184
    %736 = vmatpush1.msra.mxu0 %v183
    %737 = vmatprep.subr.mxu0 %v186
    %738 = vmatpush1.msra.mxu0 %v185
    %739 = vmatprep.subr.mxu0 %v188
    %740 = vmatpush1.msra.mxu0 %v187
    %741 = vmatprep.subr.mxu0 %v190
    %742 = vmatpush1.msra.mxu0 %v189
    %743 = vmatprep.subr.mxu0 0.0
    %744 = vmatpush1.msra.mxu0 0.0
    %745 = vmatprep.subr.mxu0 0.0
    %746 = vmatpush1.msra.mxu0 0.0
    %747 = vmatprep.subr.mxu0 0.0
    %748 = vmatpush1.msra.mxu0 0.0
    %749 = vmatprep.subr.mxu0 0.0
    %750 = vmatpush1.msra.mxu0 0.0
    %751 = vmatprep.subr.mxu0 0.0
    %752 = vmatpush1.msra.mxu0 0.0
    %753 = vmatprep.subr.mxu0 0.0
    %754 = vmatpush1.msra.mxu0 0.0
    %755 = vmatprep.subr.mxu0 0.0
    %756 = vmatpush1.msra.mxu0 0.0
    %757 = vmatprep.subr.mxu0 0.0
    %758 = vmatpush1.msra.mxu0 0.0
    %759 = vmatprep.subr.mxu0 0.0
    %760 = vmatpush1.msra.mxu0 0.0
    %761 = vmatprep.subr.mxu0 0.0
    %762 = vmatpush1.msra.mxu0 0.0
    %763 = vmatprep.subr.mxu0 0.0
    %764 = vmatpush1.msra.mxu0 0.0
    %765 = vmatprep.subr.mxu0 0.0
    %766 = vmatpush1.msra.mxu0 0.0
    %767 = vmatprep.subr.mxu0 0.0
    %768 = vmatpush1.msra.mxu0 0.0
    %769 = vmatprep.subr.mxu0 0.0
    %770 = vmatpush1.msra.mxu0 0.0
    %771 = vmatprep.subr.mxu0 0.0
    %772 = vmatpush1.msra.mxu0 0.0
    %773 = vmatprep.subr.mxu0 0.0
    %774 = vmatpush1.msra.mxu0 0.0
    %775 = vmatprep.subr.mxu0 0.0
    %776 = vmatpush1.msra.mxu0 0.0
    %777 = vmatprep.subr.mxu0 0.0
    %778 = vmatpush1.msra.mxu0 0.0
    %779 = vmatprep.subr.mxu0 0.0
    %780 = vmatpush1.msra.mxu0 0.0
    %781 = vmatprep.subr.mxu0 0.0
    %782 = vmatpush1.msra.mxu0 0.0
    %783 = vmatprep.subr.mxu0 0.0
    %784 = vmatpush1.msra.mxu0 0.0
    %785 = vmatprep.subr.mxu0 0.0
    %786 = vmatpush1.msra.mxu0 0.0
    %787 = vmatprep.subr.mxu0 0.0
    %788 = vmatpush1.msra.mxu0 0.0
    %789 = vmatprep.subr.mxu0 0.0
    %790 = vmatpush1.msra.mxu0 0.0
    %791 = vmatprep.mubr.f32.mxu0 0.0
    %792 = vmatmul.mubr.f32.gmra.mrb[0].mxu0 %v725
    %v793 = vpop.f32.mrb[0].mxu0
    %v794 = vadd.f32 0.0, %v793
    %v795 = vpop.f32.mrb[0].mxu0
    %v796 = vadd.f32 0.0, %v795
    %797 = vdwg.mxu0
    %v800 = vrot.slane %v794, 6
    %v801 = vrot.slane %v796, 6
    %v804 = vadd.f32 %v171, %v800
    %v805 = vadd.f32 %v173, %v801
    %v806 = vxor.u32 %v804, 2147483648
    %v807 = vmul.f32 %v806, 1.442695
    %v808 = vpow.pop %v807
    %v809 = vadd.f32 %v808, 1.0
    %v810 = vrcp.pop %v809
    %v811 = vmul.f32 1.0, %v810
    %v812 = vtanh.pop %v805
    %v813 = vxor.u32 %v805, 2147483648
    %v814 = vmul.f32 %v813, 1.442695
    %v815 = vpow.pop %v814
    %v816 = vadd.f32 %v815, 1.0
    %v817 = vrcp.pop %v816
    %v818 = vmul.f32 1.0, %v817
    %v820 = vrot.slane %v719, 6
    %v822 = vmul.f32 %v811, %v820
    %v823 = vmul.f32 %v811, %v812
    %825 = vrot.lane.b32.xlu0 %v823, 64
    %v826 = vpop.permute.xlu0 %825
    %v828 = vadd.f32 %v822, %v826
    %v829 = vtanh.pop %v828
    %v830 = vmul.f32 %v818, %v829
    %v832 = vrot.slane %v830, 2
    %833 = vrot.lane.b32.xlu0 %v832, 64
    %v834 = vpop.permute.xlu0 %833
    %v835 = vsel %vm91, %v834, 0
    %837 = vmatprep.subr.mxu0 %v176
    %838 = vmatpush1.msra.mxu0 %v175
    %839 = vmatprep.subr.mxu0 %v178
    %840 = vmatpush1.msra.mxu0 %v177
    %841 = vmatprep.subr.mxu0 %v180
    %842 = vmatpush1.msra.mxu0 %v179
    %843 = vmatprep.subr.mxu0 %v182
    %844 = vmatpush1.msra.mxu0 %v181
    %845 = vmatprep.subr.mxu0 %v184
    %846 = vmatpush1.msra.mxu0 %v183
    %847 = vmatprep.subr.mxu0 %v186
    %848 = vmatpush1.msra.mxu0 %v185
    %849 = vmatprep.subr.mxu0 %v188
    %850 = vmatpush1.msra.mxu0 %v187
    %851 = vmatprep.subr.mxu0 %v190
    %852 = vmatpush1.msra.mxu0 %v189
    %853 = vmatprep.subr.mxu0 0.0
    %854 = vmatpush1.msra.mxu0 0.0
    %855 = vmatprep.subr.mxu0 0.0
    %856 = vmatpush1.msra.mxu0 0.0
    %857 = vmatprep.subr.mxu0 0.0
    %858 = vmatpush1.msra.mxu0 0.0
    %859 = vmatprep.subr.mxu0 0.0
    %860 = vmatpush1.msra.mxu0 0.0
    %861 = vmatprep.subr.mxu0 0.0
    %862 = vmatpush1.msra.mxu0 0.0
    %863 = vmatprep.subr.mxu0 0.0
    %864 = vmatpush1.msra.mxu0 0.0
    %865 = vmatprep.subr.mxu0 0.0
    %866 = vmatpush1.msra.mxu0 0.0
    %867 = vmatprep.subr.mxu0 0.0
    %868 = vmatpush1.msra.mxu0 0.0
    %869 = vmatprep.subr.mxu0 0.0
    %870 = vmatpush1.msra.mxu0 0.0
    %871 = vmatprep.subr.mxu0 0.0
    %872 = vmatpush1.msra.mxu0 0.0
    %873 = vmatprep.subr.mxu0 0.0
    %874 = vmatpush1.msra.mxu0 0.0
    %875 = vmatprep.subr.mxu0 0.0
    %876 = vmatpush1.msra.mxu0 0.0
    %877 = vmatprep.subr.mxu0 0.0
    %878 = vmatpush1.msra.mxu0 0.0
    %879 = vmatprep.subr.mxu0 0.0
    %880 = vmatpush1.msra.mxu0 0.0
    %881 = vmatprep.subr.mxu0 0.0
    %882 = vmatpush1.msra.mxu0 0.0
    %883 = vmatprep.subr.mxu0 0.0
    %884 = vmatpush1.msra.mxu0 0.0
    %885 = vmatprep.subr.mxu0 0.0
    %886 = vmatpush1.msra.mxu0 0.0
    %887 = vmatprep.subr.mxu0 0.0
    %888 = vmatpush1.msra.mxu0 0.0
    %889 = vmatprep.subr.mxu0 0.0
    %890 = vmatpush1.msra.mxu0 0.0
    %891 = vmatprep.subr.mxu0 0.0
    %892 = vmatpush1.msra.mxu0 0.0
    %893 = vmatprep.subr.mxu0 0.0
    %894 = vmatpush1.msra.mxu0 0.0
    %895 = vmatprep.subr.mxu0 0.0
    %896 = vmatpush1.msra.mxu0 0.0
    %897 = vmatprep.subr.mxu0 0.0
    %898 = vmatpush1.msra.mxu0 0.0
    %899 = vmatprep.subr.mxu0 0.0
    %900 = vmatpush1.msra.mxu0 0.0
    %901 = vmatprep.mubr.f32.mxu0 0.0
    %902 = vmatmul.mubr.f32.gmra.mrb[0].mxu0 %v835
    %v903 = vpop.f32.mrb[0].mxu0
    %v904 = vadd.f32 0.0, %v903
    %v905 = vpop.f32.mrb[0].mxu0
    %v906 = vadd.f32 0.0, %v905
    %907 = vdwg.mxu0
    %v910 = vrot.slane %v904, 4
    %v911 = vrot.slane %v906, 4
    %v914 = vadd.f32 %v171, %v910
    %v915 = vadd.f32 %v173, %v911
    %v916 = vxor.u32 %v914, 2147483648
    %v917 = vmul.f32 %v916, 1.442695
    %v918 = vpow.pop %v917
    %v919 = vadd.f32 %v918, 1.0
    %v920 = vrcp.pop %v919
    %v921 = vmul.f32 1.0, %v920
    %v922 = vtanh.pop %v915
    %v923 = vxor.u32 %v915, 2147483648
    %v924 = vmul.f32 %v923, 1.442695
    %v925 = vpow.pop %v924
    %v926 = vadd.f32 %v925, 1.0
    %v927 = vrcp.pop %v926
    %v928 = vmul.f32 1.0, %v927
    %v930 = vrot.slane %v828, 6
    %v932 = vmul.f32 %v921, %v930
    %v933 = vmul.f32 %v921, %v922
    %935 = vrot.lane.b32.xlu0 %v933, 64
    %v936 = vpop.permute.xlu0 %935
    %v938 = vadd.f32 %v932, %v936
    %v939 = vtanh.pop %v938
    %v940 = vmul.f32 %v928, %v939
    %v942 = vrot.slane %v940, 4
    %943 = vrot.lane.b32.xlu0 %v942, 64
    %v944 = vpop.permute.xlu0 %943
    %v945 = vsel %vm91, %v944, 0
    %947 = vmatprep.subr.mxu0 %v176
    %948 = vmatpush1.msra.mxu0 %v175
    %949 = vmatprep.subr.mxu0 %v178
    %950 = vmatpush1.msra.mxu0 %v177
    %951 = vmatprep.subr.mxu0 %v180
    %952 = vmatpush1.msra.mxu0 %v179
    %953 = vmatprep.subr.mxu0 %v182
    %954 = vmatpush1.msra.mxu0 %v181
    %955 = vmatprep.subr.mxu0 %v184
    %956 = vmatpush1.msra.mxu0 %v183
    %957 = vmatprep.subr.mxu0 %v186
    %958 = vmatpush1.msra.mxu0 %v185
    %959 = vmatprep.subr.mxu0 %v188
    %960 = vmatpush1.msra.mxu0 %v187
    %961 = vmatprep.subr.mxu0 %v190
    %962 = vmatpush1.msra.mxu0 %v189
    %963 = vmatprep.subr.mxu0 0.0
    %964 = vmatpush1.msra.mxu0 0.0
    %965 = vmatprep.subr.mxu0 0.0
    %966 = vmatpush1.msra.mxu0 0.0
    %967 = vmatprep.subr.mxu0 0.0
    %968 = vmatpush1.msra.mxu0 0.0
    %969 = vmatprep.subr.mxu0 0.0
    %970 = vmatpush1.msra.mxu0 0.0
    %971 = vmatprep.subr.mxu0 0.0
    %972 = vmatpush1.msra.mxu0 0.0
    %973 = vmatprep.subr.mxu0 0.0
    %974 = vmatpush1.msra.mxu0 0.0
    %975 = vmatprep.subr.mxu0 0.0
    %976 = vmatpush1.msra.mxu0 0.0
    %977 = vmatprep.subr.mxu0 0.0
    %978 = vmatpush1.msra.mxu0 0.0
    %979 = vmatprep.subr.mxu0 0.0
    %980 = vmatpush1.msra.mxu0 0.0
    %981 = vmatprep.subr.mxu0 0.0
    %982 = vmatpush1.msra.mxu0 0.0
    %983 = vmatprep.subr.mxu0 0.0
    %984 = vmatpush1.msra.mxu0 0.0
    %985 = vmatprep.subr.mxu0 0.0
    %986 = vmatpush1.msra.mxu0 0.0
    %987 = vmatprep.subr.mxu0 0.0
    %988 = vmatpush1.msra.mxu0 0.0
    %989 = vmatprep.subr.mxu0 0.0
    %990 = vmatpush1.msra.mxu0 0.0
    %991 = vmatprep.subr.mxu0 0.0
    %992 = vmatpush1.msra.mxu0 0.0
    %993 = vmatprep.subr.mxu0 0.0
    %994 = vmatpush1.msra.mxu0 0.0
    %995 = vmatprep.subr.mxu0 0.0
    %996 = vmatpush1.msra.mxu0 0.0
    %997 = vmatprep.subr.mxu0 0.0
    %998 = vmatpush1.msra.mxu0 0.0
    %999 = vmatprep.subr.mxu0 0.0
    %1000 = vmatpush1.msra.mxu0 0.0
    %1001 = vmatprep.subr.mxu0 0.0
    %1002 = vmatpush1.msra.mxu0 0.0
    %1003 = vmatprep.subr.mxu0 0.0
    %1004 = vmatpush1.msra.mxu0 0.0
    %1005 = vmatprep.subr.mxu0 0.0
    %1006 = vmatpush1.msra.mxu0 0.0
    %1007 = vmatprep.subr.mxu0 0.0
    %1008 = vmatpush1.msra.mxu0 0.0
    %1009 = vmatprep.subr.mxu0 0.0
    %1010 = vmatpush1.msra.mxu0 0.0
    %1011 = vmatprep.mubr.f32.mxu0 0.0
    %1012 = vmatmul.mubr.f32.gmra.mrb[0].mxu0 %v945
    %v1013 = vpop.f32.mrb[0].mxu0
    %v1014 = vadd.f32 0.0, %v1013
    %v1015 = vpop.f32.mrb[0].mxu0
    %v1016 = vadd.f32 0.0, %v1015
    %1017 = vdwg.mxu0
    %v1020 = vrot.slane %v1014, 2
    %v1021 = vrot.slane %v1016, 2
    %v1024 = vadd.f32 %v171, %v1020
    %v1025 = vadd.f32 %v173, %v1021
    %v1026 = vxor.u32 %v1024, 2147483648
    %v1027 = vmul.f32 %v1026, 1.442695
    %v1028 = vpow.pop %v1027
    %v1029 = vadd.f32 %v1028, 1.0
    %v1030 = vrcp.pop %v1029
    %v1031 = vmul.f32 1.0, %v1030
    %v1032 = vtanh.pop %v1025
    %v1033 = vxor.u32 %v1025, 2147483648
    %v1034 = vmul.f32 %v1033, 1.442695
    %v1035 = vpow.pop %v1034
    %v1036 = vadd.f32 %v1035, 1.0
    %v1037 = vrcp.pop %v1036
    %v1038 = vmul.f32 1.0, %v1037
    %v1040 = vrot.slane %v938, 6
    %v1042 = vmul.f32 %v1031, %v1040
    %v1043 = vmul.f32 %v1031, %v1032
    %1045 = vrot.lane.b32.xlu0 %v1043, 64
    %v1046 = vpop.permute.xlu0 %1045
    %v1048 = vadd.f32 %v1042, %v1046
    %v1049 = vtanh.pop %v1048
    %v1050 = vmul.f32 %v1038, %v1049
    %1052 = vrot.lane.b32.xlu0 %v1050, 64
    %v1053 = vpop.permute.xlu0 %1052
    %vm1055 = vcmask 523270
    %1056 = vst.msk [vmem:[#allocation8 - $0x6] sm:$0xc0] %vm1055, %v1053
    %v1057 = vld [vmem:[%s4] sm:$0xff]
    %v1058 = vld [vmem:[%s4 + $0x8] sm:$0xff]
    %v1059 = vld [vmem:[%s4 + $0x10] sm:$0xff]
    %v1060 = vld [vmem:[%s4 + $0x18] sm:$0xff]
    %v1061 = vld [vmem:[%s4 + $0x20] sm:$0xff]
    %v1062 = vld [vmem:[%s4 + $0x28] sm:$0xff]
    %v1063 = vld [vmem:[%s4 + $0x30] sm:$0xff]
    %v1064 = vld [vmem:[%s4 + $0x38] sm:$0xff]
    %v1065 = vld [vmem:[%s5] sm:$0x1]
    %v1067 = vlaneseq
    %v1068 = vshrl.u32 %v1067, 7
    %v1069 = vsub.s32 0, %v1068
    %v1070 = vrot.slane %v1065, %v1069
    %v1072 = vrot.slane %v1050, 6
    %1073 = vrot.lane.b32.xlu0 %v1072, 64
    %v1074 = vpop.permute.xlu0 %1073
    %v1075 = vsel %vm91, %v1074, 0
    %1077 = vmatprep.subr.mxu0 0.0
    %1078 = vmatpush1.msra.mxu0 %v1057
    %1079 = vmatprep.subr.mxu0 0.0
    %1080 = vmatpush1.msra.mxu0 %v1058
    %1081 = vmatprep.subr.mxu0 0.0
    %1082 = vmatpush1.msra.mxu0 %v1059
    %1083 = vmatprep.subr.mxu0 0.0
    %1084 = vmatpush1.msra.mxu0 %v1060
    %1085 = vmatprep.subr.mxu0 0.0
    %1086 = vmatpush1.msra.mxu0 %v1061
    %1087 = vmatprep.subr.mxu0 0.0
    %1088 = vmatpush1.msra.mxu0 %v1062
    %1089 = vmatprep.subr.mxu0 0.0
    %1090 = vmatpush1.msra.mxu0 %v1063
    %1091 = vmatprep.subr.mxu0 0.0
    %1092 = vmatpush1.msra.mxu0 %v1064
    %1093 = vmatprep.subr.mxu0 0.0
    %1094 = vmatpush1.msra.mxu0 0.0
    %1095 = vmatprep.subr.mxu0 0.0
    %1096 = vmatpush1.msra.mxu0 0.0
    %1097 = vmatprep.subr.mxu0 0.0
    %1098 = vmatpush1.msra.mxu0 0.0
    %1099 = vmatprep.subr.mxu0 0.0
    %1100 = vmatpush1.msra.mxu0 0.0
    %1101 = vmatprep.subr.mxu0 0.0
    %1102 = vmatpush1.msra.mxu0 0.0
    %1103 = vmatprep.subr.mxu0 0.0
    %1104 = vmatpush1.msra.mxu0 0.0
    %1105 = vmatprep.subr.mxu0 0.0
    %1106 = vmatpush1.msra.mxu0 0.0
    %1107 = vmatprep.subr.mxu0 0.0
    %1108 = vmatpush1.msra.mxu0 0.0
    %1109 = vmatprep.subr.mxu0 0.0
    %1110 = vmatpush1.msra.mxu0 0.0
    %1111 = vmatprep.subr.mxu0 0.0
    %1112 = vmatpush1.msra.mxu0 0.0
    %1113 = vmatprep.subr.mxu0 0.0
    %1114 = vmatpush1.msra.mxu0 0.0
    %1115 = vmatprep.subr.mxu0 0.0
    %1116 = vmatpush1.msra.mxu0 0.0
    %1117 = vmatprep.subr.mxu0 0.0
    %1118 = vmatpush1.msra.mxu0 0.0
    %1119 = vmatprep.subr.mxu0 0.0
    %1120 = vmatpush1.msra.mxu0 0.0
    %1121 = vmatprep.subr.mxu0 0.0
    %1122 = vmatpush1.msra.mxu0 0.0
    %1123 = vmatprep.subr.mxu0 0.0
    %1124 = vmatpush1.msra.mxu0 0.0
    %1125 = vmatprep.subr.mxu0 0.0
    %1126 = vmatpush1.msra.mxu0 0.0
    %1127 = vmatprep.subr.mxu0 0.0
    %1128 = vmatpush1.msra.mxu0 0.0
    %1129 = vmatprep.subr.mxu0 0.0
    %1130 = vmatpush1.msra.mxu0 0.0
    %1131 = vmatprep.subr.mxu0 0.0
    %1132 = vmatpush1.msra.mxu0 0.0
    %1133 = vmatprep.subr.mxu0 0.0
    %1134 = vmatpush1.msra.mxu0 0.0
    %1135 = vmatprep.subr.mxu0 0.0
    %1136 = vmatpush1.msra.mxu0 0.0
    %1137 = vmatprep.subr.mxu0 0.0
    %1138 = vmatpush1.msra.mxu0 0.0
    %1139 = vmatprep.subr.mxu0 0.0
    %1140 = vmatpush1.msra.mxu0 0.0
    %1141 = vmatprep.mubr.f32.mxu0 0.0
    %1142 = vmatmul.mubr.f32.gmra.mrb[0].mxu0 %v1075
    %v1143 = vpop.f32.mrb[0].mxu0
    %v1144 = vadd.f32 %v1070, %v1143
    %v1145 = vpop.f32.mrb[0].mxu0
    %1146 = vdwg.mxu0
    %v1147 = vmax.f32 %v1144, 0.0
    %v1148 = vld [vmem:[%s6] sm:$0xff]
    %v1149 = vld [vmem:[%s6 + $0x8] sm:$0xff]
    %v1150 = vld [vmem:[%s6 + $0x10] sm:$0xff]
    %v1151 = vld [vmem:[%s6 + $0x18] sm:$0xff]
    %v1152 = vld [vmem:[%s7] sm:$0x1]
    %v1154 = vlaneseq
    %v1155 = vshrl.u32 %v1154, 7
    %v1156 = vsub.s32 0, %v1155
    %v1157 = vrot.slane %v1152, %v1156
    %vm1159 = vcmask 261120
    %v1161 = vsel %vm1159, %v1147, 0
    %1163 = vmatprep.subr.mxu0 0.0
    %1164 = vmatpush1.msra.mxu0 %v1148
    %1165 = vmatprep.subr.mxu0 0.0
    %1166 = vmatpush1.msra.mxu0 %v1149
    %1167 = vmatprep.subr.mxu0 0.0
    %1168 = vmatpush1.msra.mxu0 %v1150
    %1169 = vmatprep.subr.mxu0 0.0
    %1170 = vmatpush1.msra.mxu0 %v1151
    %1171 = vmatprep.subr.mxu0 0.0
    %1172 = vmatpush1.msra.mxu0 0.0
    %1173 = vmatprep.subr.mxu0 0.0
    %1174 = vmatpush1.msra.mxu0 0.0
    %1175 = vmatprep.subr.mxu0 0.0
    %1176 = vmatpush1.msra.mxu0 0.0
    %1177 = vmatprep.subr.mxu0 0.0
    %1178 = vmatpush1.msra.mxu0 0.0
    %1179 = vmatprep.subr.mxu0 0.0
    %1180 = vmatpush1.msra.mxu0 0.0
    %1181 = vmatprep.subr.mxu0 0.0
    %1182 = vmatpush1.msra.mxu0 0.0
    %1183 = vmatprep.subr.mxu0 0.0
    %1184 = vmatpush1.msra.mxu0 0.0
    %1185 = vmatprep.subr.mxu0 0.0
    %1186 = vmatpush1.msra.mxu0 0.0
    %1187 = vmatprep.subr.mxu0 0.0
    %1188 = vmatpush1.msra.mxu0 0.0
    %1189 = vmatprep.subr.mxu0 0.0
    %1190 = vmatpush1.msra.mxu0 0.0
    %1191 = vmatprep.subr.mxu0 0.0
    %1192 = vmatpush1.msra.mxu0 0.0
    %1193 = vmatprep.subr.mxu0 0.0
    %1194 = vmatpush1.msra.mxu0 0.0
    %1195 = vmatprep.subr.mxu0 0.0
    %1196 = vmatpush1.msra.mxu0 0.0
    %1197 = vmatprep.subr.mxu0 0.0
    %1198 = vmatpush1.msra.mxu0 0.0
    %1199 = vmatprep.subr.mxu0 0.0
    %1200 = vmatpush1.msra.mxu0 0.0
    %1201 = vmatprep.subr.mxu0 0.0
    %1202 = vmatpush1.msra.mxu0 0.0
    %1203 = vmatprep.subr.mxu0 0.0
    %1204 = vmatpush1.msra.mxu0 0.0
    %1205 = vmatprep.subr.mxu0 0.0
    %1206 = vmatpush1.msra.mxu0 0.0
    %1207 = vmatprep.subr.mxu0 0.0
    %1208 = vmatpush1.msra.mxu0 0.0
    %1209 = vmatprep.subr.mxu0 0.0
    %1210 = vmatpush1.msra.mxu0 0.0
    %1211 = vmatprep.subr.mxu0 0.0
    %1212 = vmatpush1.msra.mxu0 0.0
    %1213 = vmatprep.subr.mxu0 0.0
    %1214 = vmatpush1.msra.mxu0 0.0
    %1215 = vmatprep.subr.mxu0 0.0
    %1216 = vmatpush1.msra.mxu0 0.0
    %1217 = vmatprep.subr.mxu0 0.0
    %1218 = vmatpush1.msra.mxu0 0.0
    %1219 = vmatprep.subr.mxu0 0.0
    %1220 = vmatpush1.msra.mxu0 0.0
    %1221 = vmatprep.subr.mxu0 0.0
    %1222 = vmatpush1.msra.mxu0 0.0
    %1223 = vmatprep.subr.mxu0 0.0
    %1224 = vmatpush1.msra.mxu0 0.0
    %1225 = vmatprep.subr.mxu0 0.0
    %1226 = vmatpush1.msra.mxu0 0.0
    %1227 = vmatprep.mubr.f32.mxu0 0.0
    %1228 = vmatmul.mubr.f32.gmra.mrb[0].mxu0 %v1161
    %v1229 = vpop.f32.mrb[0].mxu0
    %v1230 = vadd.f32 %v1157, %v1229
    %v1231 = vpop.f32.mrb[0].mxu0
    %1232 = vdwg.mxu0
    %vm1233 = vcmask 33792
    %1234 = vst.msk [vmem:[#allocation7] sm:$0x3] %vm1233, %v1230
    // Predicated region
    $region42: #{tpu_custom_call.1} parent=1 // pred_check
      _
    $region43: #{tpu_custom_call.1} parent=1 // pred_check_branch
      %1236 = sbr.rel (0) target = $region45
    $region44: #{tpu_custom_call.1} parent=1 // pred_region
      %s1238 = ssub.s32 32, 32
      %1239 = vsyncadd [#allocation4], %s1238
      %s1241 = sshll.u32 [#allocation7], 4
      %s1242 = int_to_ptr.vmem [resolvable:$true] %s1241
      %1244 = dma.vmem_to_hbm [thread:$0]  %s1242, 32, %s8, [#allocation4]
    $region45: #{tpu_custom_call.1} parent=1 // pred_fallthru
      _
    // Predicated region
    $region46: #{tpu_custom_call.1} parent=1 // pred_check
      _
    $region47: #{tpu_custom_call.1} parent=1 // pred_check_branch
      %1246 = sbr.rel (0) target = $region49
    $region48: #{tpu_custom_call.1} parent=1 // pred_region
      %s1248 = ssub.s32 32, 32
      %1249 = vsyncadd [#allocation9], %s1248
      %s1251 = sshll.u32 [#allocation8], 4
      %s1252 = int_to_ptr.vmem [resolvable:$true] %s1251
      %1254 = dma.vmem_to_hbm [thread:$0]  %s1252, 32, %s9, [#allocation9]
    $region49: #{tpu_custom_call.1} parent=1 // pred_fallthru
      _
    // Predicated region
    $region50: #{tpu_custom_call.1} parent=1 // pred_check
      _
    $region51: #{tpu_custom_call.1} parent=1 // pred_check_branch
      %1256 = sbr.rel (0) target = $region53
    $region52: #{tpu_custom_call.1} parent=1 // pred_region
      %1257 = dma.done [#allocation4], 32
    $region53: #{tpu_custom_call.1} parent=1 // pred_fallthru
      _
    // Predicated region
    $region54: #{tpu_custom_call.1} parent=1 // pred_check
      _
    $region55: #{tpu_custom_call.1} parent=1 // pred_check_branch
      %1259 = sbr.rel (0) target = $region57
    $region56: #{tpu_custom_call.1} parent=1 // pred_region
      %1260 = dma.done [#allocation9], 32
    $region57: #{tpu_custom_call.1} parent=1 // pred_fallthru
      _
    %1261 = vsyncpa [#allocation3], 1
    %1262 = vsyncpa [#allocation6], 1
    %1263 = vsyncpa [#allocation4], 1
    %1264 = vsyncpa [#allocation9], 1

</llo_original>
